<compile_context>
chip_gen: v7x
topology: tpu7x:2x2x1
jax: 0.10.0
libtpu: 0.0.40
codegen_flags: <defaults>
</compile_context>

<pallas_src>
import functools

import jax
import jax.numpy as jnp
from jax.experimental import pallas as pl
from jax.experimental.pallas import tpu as pltpu

KSIZE = 7
PAD = 3                              # nn.Conv2d(..., padding=3)
_C_CHUNK = 64                        # channels per inner step (bounds vreg pressure)
_BLOCK_BUDGET = 4 * 1024 * 1024      # target bytes for one (Bt, C, H*W) block


def _spatial_attn_kernel(w_ref, mask_ref, x_ref, o_ref, pad_ref, h_ref, *, W):
    """CBAM spatial attention for one (Bt, C, H*W) block.

    w_ref   : SMEM (2*49,) f32          conv weights, index = c*49 + di*7 + dj
    mask_ref: VMEM (7, HW)  f32         column-validity masks (one per dj)
    x_ref   : VMEM (Bt, C, HW)          input block  (lane-dense: HW on lanes)
    o_ref   : VMEM (Bt, C, HW)          output block
    pad_ref : VMEM (2, HW + 2*PAD*W)    zero-padded flattened [mean, max] planes
    h_ref   : VMEM (1, HW + 2*PAD)      zero-padded per-dj partial conv row
    """
    Bt, C, HW = x_ref.shape

    # ---- hoisted once per grid step ----------------------------------------
    # All 98 conv weights read from SMEM outside the unrolled conv loops.
    wv = [[[w_ref[c * KSIZE * KSIZE + di * KSIZE + dj] for dj in range(KSIZE)]
           for di in range(KSIZE)] for c in range(2)]
    # Zero the padded scratch (borders must be zero; interiors are overwritten
    # every batch element).  Tiny, and megacore-safe (no cross-step state).
    pad_ref[...] = jnp.zeros_like(pad_ref)
    h_ref[...] = jnp.zeros_like(h_ref)

    inv_c = jnp.float32(1.0 / C)
    row_off = PAD * W                 # start of the HW interior inside pad_ref

    for b in range(Bt):
        # ---- channel mean / max pooling (lane-dense, chunked over C) -------
        s_acc = jnp.zeros((1, HW), jnp.float32)
        m_acc = jnp.full((1, HW), -jnp.inf, jnp.float32)
        for c0 in range(0, C, _C_CHUNK):
            cs = min(_C_CHUNK, C - c0)
            xc = x_ref[b, c0:c0 + cs, :].astype(jnp.float32)      # (cs, HW)
            s_acc = s_acc + jnp.sum(xc, axis=0, keepdims=True)
            m_acc = jnp.maximum(m_acc, jnp.max(xc, axis=0, keepdims=True))
        pad_ref[0:1, row_off:row_off + HW] = s_acc * inv_c        # mean plane
        pad_ref[1:2, row_off:row_off + HW] = m_acc                # max  plane

        # ---- 7x7, 2->1 channel conv in flattened (H*W) layout ---------------
        # Row (di) shifts: 14 slices of the padded planes, reused for all dj.
        rows = [[pad_ref[c:c + 1, di * W:di * W + HW] for di in range(KSIZE)]
                for c in range(2)]
        acc = jnp.zeros((1, HW), jnp.float32)
        for dj in range(KSIZE):
            h = jnp.zeros((1, HW), jnp.float32)
            for c in range(2):
                for di in range(KSIZE):
                    h = h + wv[c][di][dj] * rows[c][di]
            # Column (dj) shift via the zero-padded h scratch; the column mask
            # zeroes positions where j + dj - 3 falls outside [0, W).
            h_ref[:, PAD:PAD + HW] = h
            acc = acc + mask_ref[dj:dj + 1, :] * h_ref[:, dj:dj + HW]

        gate = jax.nn.sigmoid(acc)                                # (1, HW)

        # ---- broadcasted refinement: out = x * sigmoid(conv) ----------------
        for c0 in range(0, C, _C_CHUNK):
            cs = min(_C_CHUNK, C - c0)
            xc = x_ref[b, c0:c0 + cs, :].astype(jnp.float32)
            o_ref[b, c0:c0 + cs, :] = (xc * gate).astype(o_ref.dtype)


def _pick_block_batch(B, bytes_per_batch):
    """Largest batch tile that fits the VMEM budget, keeping >=2 grid steps
    (when possible) so megacore / the pipeline have independent work."""
    best = 1
    for bt in range(1, B + 1):
        if B % bt:
            continue
        if bt * bytes_per_batch > _BLOCK_BUDGET:
            continue
        if B // bt < min(B, 2):
            continue
        best = bt
    return best


@jax.jit
def spatial_attention(x, conv_w):
    """x: (B, C, H, W); conv_w: (1, 2, 7, 7) PyTorch OIHW.  Returns (B, C, H, W)."""
    B, C, H, W = x.shape
    HW = H * W

    x_flat = x.reshape(B, C, HW)                          # lane-dense layout
    w_flat = conv_w.astype(jnp.float32).reshape(2 * KSIZE * KSIZE)

    # Column-validity masks for the flattened conv (one per kernel column dj).
    j_idx = jnp.arange(HW, dtype=jnp.int32) % W
    col_mask = jnp.stack(
        [((j_idx + (dj - PAD) >= 0) & (j_idx + (dj - PAD) < W)).astype(jnp.float32)
         for dj in range(KSIZE)], axis=0)                 # (7, HW)

    bt = _pick_block_batch(B, C * HW * x.dtype.itemsize)
    grid = (B // bt,)
    block_bytes = bt * C * HW * x.dtype.itemsize
    # in + out, double-buffered, plus headroom; capped below v7x's 64 MiB VMEM.
    vmem_limit = int(min(56 * 1024 * 1024,
                         max(32 * 1024 * 1024, 4 * block_bytes + (4 << 20))))
    # TODO(synk): for very large C*H*W per batch element (block > ~12 MiB) add a
    # channel-tile grid axis (two-pass mean/max) instead of one monolithic block.

    kernel = functools.partial(_spatial_attn_kernel, W=W)

    out_flat = pl.pallas_call(
        kernel,
        out_shape=jax.ShapeDtypeStruct((B, C, HW), x.dtype),
        grid_spec=pltpu.PrefetchScalarGridSpec(
            num_scalar_prefetch=0,
            grid=grid,
            in_specs=[
                pl.BlockSpec(memory_space=pltpu.MemorySpace.SMEM),     # weights
                pl.BlockSpec((KSIZE, HW), lambda i: (0, 0)),           # col masks
                pl.BlockSpec((bt, C, HW), lambda i: (i, 0, 0)),        # x
            ],
            out_specs=pl.BlockSpec((bt, C, HW), lambda i: (i, 0, 0)),
            scratch_shapes=[
                pltpu.VMEM((2, HW + 2 * PAD * W), jnp.float32),        # padded planes
                pltpu.VMEM((1, HW + 2 * PAD), jnp.float32),            # per-dj row
            ],
        ),
        compiler_params=pltpu.CompilerParams(
            dimension_semantics=("parallel",),
            vmem_limit_bytes=vmem_limit,
        ),
    )(w_flat, col_mask, x_flat)

    return out_flat.reshape(B, C, H, W)


def _reference(x, conv_w):
    """Pure-JAX reference mirroring the PyTorch forward."""
    x1 = jnp.mean(x, axis=1, keepdims=True)
    x2 = jnp.max(x, axis=1, keepdims=True)
    feats = jnp.concatenate([x1, x2], axis=1)             # (B, 2, H, W)
    conv = jax.lax.conv_general_dilated(
        feats, conv_w,
        window_strides=(1, 1),
        padding=((PAD, PAD), (PAD, PAD)),
        dimension_numbers=("NCHW", "OIHW", "NCHW"),
    )                                                      # (B, 1, H, W)
    return x * jax.nn.sigmoid(conv)


if __name__ == "__main__":
    key = jax.random.PRNGKey(0)
    kx, kw = jax.random.split(key)

    B, C, H, W = 2, 4, 16, 16
    x = jax.random.normal(kx, (B, C, H, W), dtype=jnp.float32)
    # Conv2d(2, 1, 7, bias=False) weight in OIHW: (1, 2, 7, 7).
    conv_w = jax.random.normal(kw, (1, 2, KSIZE, KSIZE), dtype=jnp.float32) * 0.1

    out = jax.block_until_ready(spatial_attention(x, conv_w))

    ref = _reference(x, conv_w)
    assert out.shape == (B, C, H, W)
    err = jnp.max(jnp.abs(out - ref))
    assert jnp.allclose(out, ref, atol=1e-5, rtol=1e-5), f"max abs err = {err}"
    print("KERNEL_OK")
</pallas_src>

<mosaic_0001>
module attributes {stable_mosaic.version = 11 : i64} {
  func.func @_spatial_attn_kernel(%arg0: i32, %arg1: memref<98xf32, #tpu.memory_space<smem>>, %arg2: memref<7x256xf32, #tpu.memory_space<vmem>>, %arg3: memref<1x4x256xf32, #tpu.memory_space<vmem>>, %arg4: memref<1x4x256xf32, #tpu.memory_space<vmem>>, %arg5: memref<2x352xf32, #tpu.memory_space<vmem>>, %arg6: memref<1x262xf32, #tpu.memory_space<vmem>>) attributes {dimension_semantics = [#tpu.dimension_semantics<parallel>], iteration_bounds = array<i64: 2>, scalar_prefetch = 0 : i64, scratch_operands = 2 : i64, tpu.core_type = #tpu.core_type<tc>, window_params = [{transform_indices = @transform_0, window_bounds = array<i64: 98>}, {pipeline_mode = #tpu.pipeline_mode<synchronous>, transform_indices = @transform_1, window_bounds = array<i64: 7, 256>}, {transform_indices = @transform_2, window_bounds = array<i64: 1, 4, 256>}, {transform_indices = @transform_3, window_bounds = array<i64: 1, 4, 256>}]} {
    %c0 = arith.constant 0 : index
    %0 = memref.load %arg1[%c0] : memref<98xf32, #tpu.memory_space<smem>>
    %c1 = arith.constant 1 : index
    %1 = memref.load %arg1[%c1] : memref<98xf32, #tpu.memory_space<smem>>
    %c2 = arith.constant 2 : index
    %2 = memref.load %arg1[%c2] : memref<98xf32, #tpu.memory_space<smem>>
    %c3 = arith.constant 3 : index
    %3 = memref.load %arg1[%c3] : memref<98xf32, #tpu.memory_space<smem>>
    %c4 = arith.constant 4 : index
    %4 = memref.load %arg1[%c4] : memref<98xf32, #tpu.memory_space<smem>>
    %c5 = arith.constant 5 : index
    %5 = memref.load %arg1[%c5] : memref<98xf32, #tpu.memory_space<smem>>
    %c6 = arith.constant 6 : index
    %6 = memref.load %arg1[%c6] : memref<98xf32, #tpu.memory_space<smem>>
    %c7 = arith.constant 7 : index
    %7 = memref.load %arg1[%c7] : memref<98xf32, #tpu.memory_space<smem>>
    %c8 = arith.constant 8 : index
    %8 = memref.load %arg1[%c8] : memref<98xf32, #tpu.memory_space<smem>>
    %c9 = arith.constant 9 : index
    %9 = memref.load %arg1[%c9] : memref<98xf32, #tpu.memory_space<smem>>
    %c10 = arith.constant 10 : index
    %10 = memref.load %arg1[%c10] : memref<98xf32, #tpu.memory_space<smem>>
    %c11 = arith.constant 11 : index
    %11 = memref.load %arg1[%c11] : memref<98xf32, #tpu.memory_space<smem>>
    %c12 = arith.constant 12 : index
    %12 = memref.load %arg1[%c12] : memref<98xf32, #tpu.memory_space<smem>>
    %c13 = arith.constant 13 : index
    %13 = memref.load %arg1[%c13] : memref<98xf32, #tpu.memory_space<smem>>
    %c14 = arith.constant 14 : index
    %14 = memref.load %arg1[%c14] : memref<98xf32, #tpu.memory_space<smem>>
    %c15 = arith.constant 15 : index
    %15 = memref.load %arg1[%c15] : memref<98xf32, #tpu.memory_space<smem>>
    %c16 = arith.constant 16 : index
    %16 = memref.load %arg1[%c16] : memref<98xf32, #tpu.memory_space<smem>>
    %c17 = arith.constant 17 : index
    %17 = memref.load %arg1[%c17] : memref<98xf32, #tpu.memory_space<smem>>
    %c18 = arith.constant 18 : index
    %18 = memref.load %arg1[%c18] : memref<98xf32, #tpu.memory_space<smem>>
    %c19 = arith.constant 19 : index
    %19 = memref.load %arg1[%c19] : memref<98xf32, #tpu.memory_space<smem>>
    %c20 = arith.constant 20 : index
    %20 = memref.load %arg1[%c20] : memref<98xf32, #tpu.memory_space<smem>>
    %c21 = arith.constant 21 : index
    %21 = memref.load %arg1[%c21] : memref<98xf32, #tpu.memory_space<smem>>
    %c22 = arith.constant 22 : index
    %22 = memref.load %arg1[%c22] : memref<98xf32, #tpu.memory_space<smem>>
    %c23 = arith.constant 23 : index
    %23 = memref.load %arg1[%c23] : memref<98xf32, #tpu.memory_space<smem>>
    %c24 = arith.constant 24 : index
    %24 = memref.load %arg1[%c24] : memref<98xf32, #tpu.memory_space<smem>>
    %c25 = arith.constant 25 : index
    %25 = memref.load %arg1[%c25] : memref<98xf32, #tpu.memory_space<smem>>
    %c26 = arith.constant 26 : index
    %26 = memref.load %arg1[%c26] : memref<98xf32, #tpu.memory_space<smem>>
    %c27 = arith.constant 27 : index
    %27 = memref.load %arg1[%c27] : memref<98xf32, #tpu.memory_space<smem>>
    %c28 = arith.constant 28 : index
    %28 = memref.load %arg1[%c28] : memref<98xf32, #tpu.memory_space<smem>>
    %c29 = arith.constant 29 : index
    %29 = memref.load %arg1[%c29] : memref<98xf32, #tpu.memory_space<smem>>
    %c30 = arith.constant 30 : index
    %30 = memref.load %arg1[%c30] : memref<98xf32, #tpu.memory_space<smem>>
    %c31 = arith.constant 31 : index
    %31 = memref.load %arg1[%c31] : memref<98xf32, #tpu.memory_space<smem>>
    %c32 = arith.constant 32 : index
    %32 = memref.load %arg1[%c32] : memref<98xf32, #tpu.memory_space<smem>>
    %c33 = arith.constant 33 : index
    %33 = memref.load %arg1[%c33] : memref<98xf32, #tpu.memory_space<smem>>
    %c34 = arith.constant 34 : index
    %34 = memref.load %arg1[%c34] : memref<98xf32, #tpu.memory_space<smem>>
    %c35 = arith.constant 35 : index
    %35 = memref.load %arg1[%c35] : memref<98xf32, #tpu.memory_space<smem>>
    %c36 = arith.constant 36 : index
    %36 = memref.load %arg1[%c36] : memref<98xf32, #tpu.memory_space<smem>>
    %c37 = arith.constant 37 : index
    %37 = memref.load %arg1[%c37] : memref<98xf32, #tpu.memory_space<smem>>
    %c38 = arith.constant 38 : index
    %38 = memref.load %arg1[%c38] : memref<98xf32, #tpu.memory_space<smem>>
    %c39 = arith.constant 39 : index
    %39 = memref.load %arg1[%c39] : memref<98xf32, #tpu.memory_space<smem>>
    %c40 = arith.constant 40 : index
    %40 = memref.load %arg1[%c40] : memref<98xf32, #tpu.memory_space<smem>>
    %c41 = arith.constant 41 : index
    %41 = memref.load %arg1[%c41] : memref<98xf32, #tpu.memory_space<smem>>
    %c42 = arith.constant 42 : index
    %42 = memref.load %arg1[%c42] : memref<98xf32, #tpu.memory_space<smem>>
    %c43 = arith.constant 43 : index
    %43 = memref.load %arg1[%c43] : memref<98xf32, #tpu.memory_space<smem>>
    %c44 = arith.constant 44 : index
    %44 = memref.load %arg1[%c44] : memref<98xf32, #tpu.memory_space<smem>>
    %c45 = arith.constant 45 : index
    %45 = memref.load %arg1[%c45] : memref<98xf32, #tpu.memory_space<smem>>
    %c46 = arith.constant 46 : index
    %46 = memref.load %arg1[%c46] : memref<98xf32, #tpu.memory_space<smem>>
    %c47 = arith.constant 47 : index
    %47 = memref.load %arg1[%c47] : memref<98xf32, #tpu.memory_space<smem>>
    %c48 = arith.constant 48 : index
    %48 = memref.load %arg1[%c48] : memref<98xf32, #tpu.memory_space<smem>>
    %c49 = arith.constant 49 : index
    %49 = memref.load %arg1[%c49] : memref<98xf32, #tpu.memory_space<smem>>
    %c50 = arith.constant 50 : index
    %50 = memref.load %arg1[%c50] : memref<98xf32, #tpu.memory_space<smem>>
    %c51 = arith.constant 51 : index
    %51 = memref.load %arg1[%c51] : memref<98xf32, #tpu.memory_space<smem>>
    %c52 = arith.constant 52 : index
    %52 = memref.load %arg1[%c52] : memref<98xf32, #tpu.memory_space<smem>>
    %c53 = arith.constant 53 : index
    %53 = memref.load %arg1[%c53] : memref<98xf32, #tpu.memory_space<smem>>
    %c54 = arith.constant 54 : index
    %54 = memref.load %arg1[%c54] : memref<98xf32, #tpu.memory_space<smem>>
    %c55 = arith.constant 55 : index
    %55 = memref.load %arg1[%c55] : memref<98xf32, #tpu.memory_space<smem>>
    %c56 = arith.constant 56 : index
    %56 = memref.load %arg1[%c56] : memref<98xf32, #tpu.memory_space<smem>>
    %c57 = arith.constant 57 : index
    %57 = memref.load %arg1[%c57] : memref<98xf32, #tpu.memory_space<smem>>
    %c58 = arith.constant 58 : index
    %58 = memref.load %arg1[%c58] : memref<98xf32, #tpu.memory_space<smem>>
    %c59 = arith.constant 59 : index
    %59 = memref.load %arg1[%c59] : memref<98xf32, #tpu.memory_space<smem>>
    %c60 = arith.constant 60 : index
    %60 = memref.load %arg1[%c60] : memref<98xf32, #tpu.memory_space<smem>>
    %c61 = arith.constant 61 : index
    %61 = memref.load %arg1[%c61] : memref<98xf32, #tpu.memory_space<smem>>
    %c62 = arith.constant 62 : index
    %62 = memref.load %arg1[%c62] : memref<98xf32, #tpu.memory_space<smem>>
    %c63 = arith.constant 63 : index
    %63 = memref.load %arg1[%c63] : memref<98xf32, #tpu.memory_space<smem>>
    %c64 = arith.constant 64 : index
    %64 = memref.load %arg1[%c64] : memref<98xf32, #tpu.memory_space<smem>>
    %c65 = arith.constant 65 : index
    %65 = memref.load %arg1[%c65] : memref<98xf32, #tpu.memory_space<smem>>
    %c66 = arith.constant 66 : index
    %66 = memref.load %arg1[%c66] : memref<98xf32, #tpu.memory_space<smem>>
    %c67 = arith.constant 67 : index
    %67 = memref.load %arg1[%c67] : memref<98xf32, #tpu.memory_space<smem>>
    %c68 = arith.constant 68 : index
    %68 = memref.load %arg1[%c68] : memref<98xf32, #tpu.memory_space<smem>>
    %c69 = arith.constant 69 : index
    %69 = memref.load %arg1[%c69] : memref<98xf32, #tpu.memory_space<smem>>
    %c70 = arith.constant 70 : index
    %70 = memref.load %arg1[%c70] : memref<98xf32, #tpu.memory_space<smem>>
    %c71 = arith.constant 71 : index
    %71 = memref.load %arg1[%c71] : memref<98xf32, #tpu.memory_space<smem>>
    %c72 = arith.constant 72 : index
    %72 = memref.load %arg1[%c72] : memref<98xf32, #tpu.memory_space<smem>>
    %c73 = arith.constant 73 : index
    %73 = memref.load %arg1[%c73] : memref<98xf32, #tpu.memory_space<smem>>
    %c74 = arith.constant 74 : index
    %74 = memref.load %arg1[%c74] : memref<98xf32, #tpu.memory_space<smem>>
    %c75 = arith.constant 75 : index
    %75 = memref.load %arg1[%c75] : memref<98xf32, #tpu.memory_space<smem>>
    %c76 = arith.constant 76 : index
    %76 = memref.load %arg1[%c76] : memref<98xf32, #tpu.memory_space<smem>>
    %c77 = arith.constant 77 : index
    %77 = memref.load %arg1[%c77] : memref<98xf32, #tpu.memory_space<smem>>
    %c78 = arith.constant 78 : index
    %78 = memref.load %arg1[%c78] : memref<98xf32, #tpu.memory_space<smem>>
    %c79 = arith.constant 79 : index
    %79 = memref.load %arg1[%c79] : memref<98xf32, #tpu.memory_space<smem>>
    %c80 = arith.constant 80 : index
    %80 = memref.load %arg1[%c80] : memref<98xf32, #tpu.memory_space<smem>>
    %c81 = arith.constant 81 : index
    %81 = memref.load %arg1[%c81] : memref<98xf32, #tpu.memory_space<smem>>
    %c82 = arith.constant 82 : index
    %82 = memref.load %arg1[%c82] : memref<98xf32, #tpu.memory_space<smem>>
    %c83 = arith.constant 83 : index
    %83 = memref.load %arg1[%c83] : memref<98xf32, #tpu.memory_space<smem>>
    %c84 = arith.constant 84 : index
    %84 = memref.load %arg1[%c84] : memref<98xf32, #tpu.memory_space<smem>>
    %c85 = arith.constant 85 : index
    %85 = memref.load %arg1[%c85] : memref<98xf32, #tpu.memory_space<smem>>
    %c86 = arith.constant 86 : index
    %86 = memref.load %arg1[%c86] : memref<98xf32, #tpu.memory_space<smem>>
    %c87 = arith.constant 87 : index
    %87 = memref.load %arg1[%c87] : memref<98xf32, #tpu.memory_space<smem>>
    %c88 = arith.constant 88 : index
    %88 = memref.load %arg1[%c88] : memref<98xf32, #tpu.memory_space<smem>>
    %c89 = arith.constant 89 : index
    %89 = memref.load %arg1[%c89] : memref<98xf32, #tpu.memory_space<smem>>
    %c90 = arith.constant 90 : index
    %90 = memref.load %arg1[%c90] : memref<98xf32, #tpu.memory_space<smem>>
    %c91 = arith.constant 91 : index
    %91 = memref.load %arg1[%c91] : memref<98xf32, #tpu.memory_space<smem>>
    %c92 = arith.constant 92 : index
    %92 = memref.load %arg1[%c92] : memref<98xf32, #tpu.memory_space<smem>>
    %c93 = arith.constant 93 : index
    %93 = memref.load %arg1[%c93] : memref<98xf32, #tpu.memory_space<smem>>
    %c94 = arith.constant 94 : index
    %94 = memref.load %arg1[%c94] : memref<98xf32, #tpu.memory_space<smem>>
    %c95 = arith.constant 95 : index
    %95 = memref.load %arg1[%c95] : memref<98xf32, #tpu.memory_space<smem>>
    %c96 = arith.constant 96 : index
    %96 = memref.load %arg1[%c96] : memref<98xf32, #tpu.memory_space<smem>>
    %c97 = arith.constant 97 : index
    %97 = memref.load %arg1[%c97] : memref<98xf32, #tpu.memory_space<smem>>
    %cst = arith.constant 0.000000e+00 : f32
    %98 = vector.broadcast %cst : f32 to vector<2x352xf32>
    %c0_0 = arith.constant 0 : index
    %c0_1 = arith.constant 0 : index
    %99 = vector.load %arg5[%c0_0, %c0_1] : memref<2x352xf32, #tpu.memory_space<vmem>>, vector<2x352xf32>
    tpu.vector_store %arg5[%c0_0, %c0_1], %98 {strides = array<i32>} : memref<2x352xf32, #tpu.memory_space<vmem>>, vector<2x352xf32>,
    %cst_2 = arith.constant 0.000000e+00 : f32
    %100 = vector.broadcast %cst_2 : f32 to vector<1x262xf32>
    %c0_3 = arith.constant 0 : index
    %c0_4 = arith.constant 0 : index
    %101 = vector.load %arg6[%c0_3, %c0_4] : memref<1x262xf32, #tpu.memory_space<vmem>>, vector<1x262xf32>
    tpu.vector_store %arg6[%c0_3, %c0_4], %100 {strides = array<i32>} : memref<1x262xf32, #tpu.memory_space<vmem>>, vector<1x262xf32>,
    %cst_5 = arith.constant 0.000000e+00 : f32
    %102 = vector.broadcast %cst_5 : f32 to vector<1x256xf32>
    %cst_6 = arith.constant 0xFF800000 : f32
    %103 = vector.broadcast %cst_6 : f32 to vector<1x256xf32>
    %c0_7 = arith.constant 0 : index
    %c0_8 = arith.constant 0 : index
    %c0_9 = arith.constant 0 : index
    %104 = vector.load %arg3[%c0_7, %c0_8, %c0_9] : memref<1x4x256xf32, #tpu.memory_space<vmem>>, vector<1x4x256xf32>
    %105 = vector.shape_cast %104 : vector<1x4x256xf32> to vector<4x256xf32>
    %cst_10 = arith.constant dense<0.000000e+00> : vector<256xf32>
    %106 = vector.multi_reduction <add>, %105, %cst_10 [0] : vector<4x256xf32> to vector<256xf32>
    %107 = vector.shape_cast %106 : vector<256xf32> to vector<1x256xf32>
    %108 = arith.addf %102, %107 : vector<1x256xf32>
    %cst_11 = arith.constant dense<0xFF800000> : vector<256xf32>
    %109 = vector.multi_reduction <maximumf>, %105, %cst_11 [0] : vector<4x256xf32> to vector<256xf32>
    %110 = vector.shape_cast %109 : vector<256xf32> to vector<1x256xf32>
    %111 = arith.maximumf %103, %110 : vector<1x256xf32>
    %cst_12 = arith.constant 2.500000e-01 : f32
    %112 = vector.broadcast %cst_12 : f32 to vector<1x256xf32>
    %113 = arith.mulf %108, %112 : vector<1x256xf32>
    %c0_13 = arith.constant 0 : index
    %c48_14 = arith.constant 48 : index
    %114 = vector.load %arg5[%c0_13, %c48_14] : memref<2x352xf32, #tpu.memory_space<vmem>>, vector<1x256xf32>
    tpu.vector_store %arg5[%c0_13, %c48_14], %113 {strides = array<i32>} : memref<2x352xf32, #tpu.memory_space<vmem>>, vector<1x256xf32>,
    %c1_15 = arith.constant 1 : index
    %c48_16 = arith.constant 48 : index
    %115 = vector.load %arg5[%c1_15, %c48_16] : memref<2x352xf32, #tpu.memory_space<vmem>>, vector<1x256xf32>
    tpu.vector_store %arg5[%c1_15, %c48_16], %111 {strides = array<i32>} : memref<2x352xf32, #tpu.memory_space<vmem>>, vector<1x256xf32>,
    %c0_17 = arith.constant 0 : index
    %c0_18 = arith.constant 0 : index
    %116 = vector.load %arg5[%c0_17, %c0_18] : memref<2x352xf32, #tpu.memory_space<vmem>>, vector<1x256xf32>
    %c0_19 = arith.constant 0 : index
    %c16_20 = arith.constant 16 : index
    %117 = vector.load %arg5[%c0_19, %c16_20] : memref<2x352xf32, #tpu.memory_space<vmem>>, vector<1x256xf32>
    %c0_21 = arith.constant 0 : index
    %c32_22 = arith.constant 32 : index
    %118 = vector.load %arg5[%c0_21, %c32_22] : memref<2x352xf32, #tpu.memory_space<vmem>>, vector<1x256xf32>
    %c0_23 = arith.constant 0 : index
    %c48_24 = arith.constant 48 : index
    %119 = vector.load %arg5[%c0_23, %c48_24] : memref<2x352xf32, #tpu.memory_space<vmem>>, vector<1x256xf32>
    %c0_25 = arith.constant 0 : index
    %c64_26 = arith.constant 64 : index
    %120 = vector.load %arg5[%c0_25, %c64_26] : memref<2x352xf32, #tpu.memory_space<vmem>>, vector<1x256xf32>
    %c0_27 = arith.constant 0 : index
    %c80_28 = arith.constant 80 : index
    %121 = vector.load %arg5[%c0_27, %c80_28] : memref<2x352xf32, #tpu.memory_space<vmem>>, vector<1x256xf32>
    %c0_29 = arith.constant 0 : index
    %c96_30 = arith.constant 96 : index
    %122 = vector.load %arg5[%c0_29, %c96_30] : memref<2x352xf32, #tpu.memory_space<vmem>>, vector<1x256xf32>
    %c1_31 = arith.constant 1 : index
    %c0_32 = arith.constant 0 : index
    %123 = vector.load %arg5[%c1_31, %c0_32] : memref<2x352xf32, #tpu.memory_space<vmem>>, vector<1x256xf32>
    %c1_33 = arith.constant 1 : index
    %c16_34 = arith.constant 16 : index
    %124 = vector.load %arg5[%c1_33, %c16_34] : memref<2x352xf32, #tpu.memory_space<vmem>>, vector<1x256xf32>
    %c1_35 = arith.constant 1 : index
    %c32_36 = arith.constant 32 : index
    %125 = vector.load %arg5[%c1_35, %c32_36] : memref<2x352xf32, #tpu.memory_space<vmem>>, vector<1x256xf32>
    %c1_37 = arith.constant 1 : index
    %c48_38 = arith.constant 48 : index
    %126 = vector.load %arg5[%c1_37, %c48_38] : memref<2x352xf32, #tpu.memory_space<vmem>>, vector<1x256xf32>
    %c1_39 = arith.constant 1 : index
    %c64_40 = arith.constant 64 : index
    %127 = vector.load %arg5[%c1_39, %c64_40] : memref<2x352xf32, #tpu.memory_space<vmem>>, vector<1x256xf32>
    %c1_41 = arith.constant 1 : index
    %c80_42 = arith.constant 80 : index
    %128 = vector.load %arg5[%c1_41, %c80_42] : memref<2x352xf32, #tpu.memory_space<vmem>>, vector<1x256xf32>
    %c1_43 = arith.constant 1 : index
    %c96_44 = arith.constant 96 : index
    %129 = vector.load %arg5[%c1_43, %c96_44] : memref<2x352xf32, #tpu.memory_space<vmem>>, vector<1x256xf32>
    %cst_45 = arith.constant 0.000000e+00 : f32
    %130 = vector.broadcast %cst_45 : f32 to vector<1x256xf32>
    %cst_46 = arith.constant 0.000000e+00 : f32
    %131 = vector.broadcast %cst_46 : f32 to vector<1x256xf32>
    %132 = vector.broadcast %0 : f32 to vector<1x256xf32>
    %133 = arith.mulf %132, %116 : vector<1x256xf32>
    %134 = arith.addf %131, %133 : vector<1x256xf32>
    %135 = vector.broadcast %7 : f32 to vector<1x256xf32>
    %136 = arith.mulf %135, %117 : vector<1x256xf32>
    %137 = arith.addf %134, %136 : vector<1x256xf32>
    %138 = vector.broadcast %14 : f32 to vector<1x256xf32>
    %139 = arith.mulf %138, %118 : vector<1x256xf32>
    %140 = arith.addf %137, %139 : vector<1x256xf32>
    %141 = vector.broadcast %21 : f32 to vector<1x256xf32>
    %142 = arith.mulf %141, %119 : vector<1x256xf32>
    %143 = arith.addf %140, %142 : vector<1x256xf32>
    %144 = vector.broadcast %28 : f32 to vector<1x256xf32>
    %145 = arith.mulf %144, %120 : vector<1x256xf32>
    %146 = arith.addf %143, %145 : vector<1x256xf32>
    %147 = vector.broadcast %35 : f32 to vector<1x256xf32>
    %148 = arith.mulf %147, %121 : vector<1x256xf32>
    %149 = arith.addf %146, %148 : vector<1x256xf32>
    %150 = vector.broadcast %42 : f32 to vector<1x256xf32>
    %151 = arith.mulf %150, %122 : vector<1x256xf32>
    %152 = arith.addf %149, %151 : vector<1x256xf32>
    %153 = vector.broadcast %49 : f32 to vector<1x256xf32>
    %154 = arith.mulf %153, %123 : vector<1x256xf32>
    %155 = arith.addf %152, %154 : vector<1x256xf32>
    %156 = vector.broadcast %56 : f32 to vector<1x256xf32>
    %157 = arith.mulf %156, %124 : vector<1x256xf32>
    %158 = arith.addf %155, %157 : vector<1x256xf32>
    %159 = vector.broadcast %63 : f32 to vector<1x256xf32>
    %160 = arith.mulf %159, %125 : vector<1x256xf32>
    %161 = arith.addf %158, %160 : vector<1x256xf32>
    %162 = vector.broadcast %70 : f32 to vector<1x256xf32>
    %163 = arith.mulf %162, %126 : vector<1x256xf32>
    %164 = arith.addf %161, %163 : vector<1x256xf32>
    %165 = vector.broadcast %77 : f32 to vector<1x256xf32>
    %166 = arith.mulf %165, %127 : vector<1x256xf32>
    %167 = arith.addf %164, %166 : vector<1x256xf32>
    %168 = vector.broadcast %84 : f32 to vector<1x256xf32>
    %169 = arith.mulf %168, %128 : vector<1x256xf32>
    %170 = arith.addf %167, %169 : vector<1x256xf32>
    %171 = vector.broadcast %91 : f32 to vector<1x256xf32>
    %172 = arith.mulf %171, %129 : vector<1x256xf32>
    %173 = arith.addf %170, %172 : vector<1x256xf32>
    %c0_47 = arith.constant 0 : index
    %c3_48 = arith.constant 3 : index
    %174 = vector.load %arg6[%c0_47, %c3_48] : memref<1x262xf32, #tpu.memory_space<vmem>>, vector<1x256xf32>
    tpu.vector_store %arg6[%c0_47, %c3_48], %173 {strides = array<i32>} : memref<1x262xf32, #tpu.memory_space<vmem>>, vector<1x256xf32>,
    %c0_49 = arith.constant 0 : index
    %c0_50 = arith.constant 0 : index
    %175 = vector.load %arg2[%c0_49, %c0_50] : memref<7x256xf32, #tpu.memory_space<vmem>>, vector<1x256xf32>
    %c0_51 = arith.constant 0 : index
    %c0_52 = arith.constant 0 : index
    %176 = vector.load %arg6[%c0_51, %c0_52] : memref<1x262xf32, #tpu.memory_space<vmem>>, vector<1x256xf32>
    %177 = arith.mulf %175, %176 : vector<1x256xf32>
    %178 = arith.addf %130, %177 : vector<1x256xf32>
    %cst_53 = arith.constant 0.000000e+00 : f32
    %179 = vector.broadcast %cst_53 : f32 to vector<1x256xf32>
    %180 = vector.broadcast %1 : f32 to vector<1x256xf32>
    %181 = arith.mulf %180, %116 : vector<1x256xf32>
    %182 = arith.addf %179, %181 : vector<1x256xf32>
    %183 = vector.broadcast %8 : f32 to vector<1x256xf32>
    %184 = arith.mulf %183, %117 : vector<1x256xf32>
    %185 = arith.addf %182, %184 : vector<1x256xf32>
    %186 = vector.broadcast %15 : f32 to vector<1x256xf32>
    %187 = arith.mulf %186, %118 : vector<1x256xf32>
    %188 = arith.addf %185, %187 : vector<1x256xf32>
    %189 = vector.broadcast %22 : f32 to vector<1x256xf32>
    %190 = arith.mulf %189, %119 : vector<1x256xf32>
    %191 = arith.addf %188, %190 : vector<1x256xf32>
    %192 = vector.broadcast %29 : f32 to vector<1x256xf32>
    %193 = arith.mulf %192, %120 : vector<1x256xf32>
    %194 = arith.addf %191, %193 : vector<1x256xf32>
    %195 = vector.broadcast %36 : f32 to vector<1x256xf32>
    %196 = arith.mulf %195, %121 : vector<1x256xf32>
    %197 = arith.addf %194, %196 : vector<1x256xf32>
    %198 = vector.broadcast %43 : f32 to vector<1x256xf32>
    %199 = arith.mulf %198, %122 : vector<1x256xf32>
    %200 = arith.addf %197, %199 : vector<1x256xf32>
    %201 = vector.broadcast %50 : f32 to vector<1x256xf32>
    %202 = arith.mulf %201, %123 : vector<1x256xf32>
    %203 = arith.addf %200, %202 : vector<1x256xf32>
    %204 = vector.broadcast %57 : f32 to vector<1x256xf32>
    %205 = arith.mulf %204, %124 : vector<1x256xf32>
    %206 = arith.addf %203, %205 : vector<1x256xf32>
    %207 = vector.broadcast %64 : f32 to vector<1x256xf32>
    %208 = arith.mulf %207, %125 : vector<1x256xf32>
    %209 = arith.addf %206, %208 : vector<1x256xf32>
    %210 = vector.broadcast %71 : f32 to vector<1x256xf32>
    %211 = arith.mulf %210, %126 : vector<1x256xf32>
    %212 = arith.addf %209, %211 : vector<1x256xf32>
    %213 = vector.broadcast %78 : f32 to vector<1x256xf32>
    %214 = arith.mulf %213, %127 : vector<1x256xf32>
    %215 = arith.addf %212, %214 : vector<1x256xf32>
    %216 = vector.broadcast %85 : f32 to vector<1x256xf32>
    %217 = arith.mulf %216, %128 : vector<1x256xf32>
    %218 = arith.addf %215, %217 : vector<1x256xf32>
    %219 = vector.broadcast %92 : f32 to vector<1x256xf32>
    %220 = arith.mulf %219, %129 : vector<1x256xf32>
    %221 = arith.addf %218, %220 : vector<1x256xf32>
    %c0_54 = arith.constant 0 : index
    %c3_55 = arith.constant 3 : index
    %222 = vector.load %arg6[%c0_54, %c3_55] : memref<1x262xf32, #tpu.memory_space<vmem>>, vector<1x256xf32>
    tpu.vector_store %arg6[%c0_54, %c3_55], %221 {strides = array<i32>} : memref<1x262xf32, #tpu.memory_space<vmem>>, vector<1x256xf32>,
    %c1_56 = arith.constant 1 : index
    %c0_57 = arith.constant 0 : index
    %223 = vector.load %arg2[%c1_56, %c0_57] : memref<7x256xf32, #tpu.memory_space<vmem>>, vector<1x256xf32>
    %c0_58 = arith.constant 0 : index
    %c1_59 = arith.constant 1 : index
    %224 = vector.load %arg6[%c0_58, %c1_59] : memref<1x262xf32, #tpu.memory_space<vmem>>, vector<1x256xf32>
    %225 = arith.mulf %223, %224 : vector<1x256xf32>
    %226 = arith.addf %178, %225 : vector<1x256xf32>
    %cst_60 = arith.constant 0.000000e+00 : f32
    %227 = vector.broadcast %cst_60 : f32 to vector<1x256xf32>
    %228 = vector.broadcast %2 : f32 to vector<1x256xf32>
    %229 = arith.mulf %228, %116 : vector<1x256xf32>
    %230 = arith.addf %227, %229 : vector<1x256xf32>
    %231 = vector.broadcast %9 : f32 to vector<1x256xf32>
    %232 = arith.mulf %231, %117 : vector<1x256xf32>
    %233 = arith.addf %230, %232 : vector<1x256xf32>
    %234 = vector.broadcast %16 : f32 to vector<1x256xf32>
    %235 = arith.mulf %234, %118 : vector<1x256xf32>
    %236 = arith.addf %233, %235 : vector<1x256xf32>
    %237 = vector.broadcast %23 : f32 to vector<1x256xf32>
    %238 = arith.mulf %237, %119 : vector<1x256xf32>
    %239 = arith.addf %236, %238 : vector<1x256xf32>
    %240 = vector.broadcast %30 : f32 to vector<1x256xf32>
    %241 = arith.mulf %240, %120 : vector<1x256xf32>
    %242 = arith.addf %239, %241 : vector<1x256xf32>
    %243 = vector.broadcast %37 : f32 to vector<1x256xf32>
    %244 = arith.mulf %243, %121 : vector<1x256xf32>
    %245 = arith.addf %242, %244 : vector<1x256xf32>
    %246 = vector.broadcast %44 : f32 to vector<1x256xf32>
    %247 = arith.mulf %246, %122 : vector<1x256xf32>
    %248 = arith.addf %245, %247 : vector<1x256xf32>
    %249 = vector.broadcast %51 : f32 to vector<1x256xf32>
    %250 = arith.mulf %249, %123 : vector<1x256xf32>
    %251 = arith.addf %248, %250 : vector<1x256xf32>
    %252 = vector.broadcast %58 : f32 to vector<1x256xf32>
    %253 = arith.mulf %252, %124 : vector<1x256xf32>
    %254 = arith.addf %251, %253 : vector<1x256xf32>
    %255 = vector.broadcast %65 : f32 to vector<1x256xf32>
    %256 = arith.mulf %255, %125 : vector<1x256xf32>
    %257 = arith.addf %254, %256 : vector<1x256xf32>
    %258 = vector.broadcast %72 : f32 to vector<1x256xf32>
    %259 = arith.mulf %258, %126 : vector<1x256xf32>
    %260 = arith.addf %257, %259 : vector<1x256xf32>
    %261 = vector.broadcast %79 : f32 to vector<1x256xf32>
    %262 = arith.mulf %261, %127 : vector<1x256xf32>
    %263 = arith.addf %260, %262 : vector<1x256xf32>
    %264 = vector.broadcast %86 : f32 to vector<1x256xf32>
    %265 = arith.mulf %264, %128 : vector<1x256xf32>
    %266 = arith.addf %263, %265 : vector<1x256xf32>
    %267 = vector.broadcast %93 : f32 to vector<1x256xf32>
    %268 = arith.mulf %267, %129 : vector<1x256xf32>
    %269 = arith.addf %266, %268 : vector<1x256xf32>
    %c0_61 = arith.constant 0 : index
    %c3_62 = arith.constant 3 : index
    %270 = vector.load %arg6[%c0_61, %c3_62] : memref<1x262xf32, #tpu.memory_space<vmem>>, vector<1x256xf32>
    tpu.vector_store %arg6[%c0_61, %c3_62], %269 {strides = array<i32>} : memref<1x262xf32, #tpu.memory_space<vmem>>, vector<1x256xf32>,
    %c2_63 = arith.constant 2 : index
    %c0_64 = arith.constant 0 : index
    %271 = vector.load %arg2[%c2_63, %c0_64] : memref<7x256xf32, #tpu.memory_space<vmem>>, vector<1x256xf32>
    %c0_65 = arith.constant 0 : index
    %c2_66 = arith.constant 2 : index
    %272 = vector.load %arg6[%c0_65, %c2_66] : memref<1x262xf32, #tpu.memory_space<vmem>>, vector<1x256xf32>
    %273 = arith.mulf %271, %272 : vector<1x256xf32>
    %274 = arith.addf %226, %273 : vector<1x256xf32>
    %cst_67 = arith.constant 0.000000e+00 : f32
    %275 = vector.broadcast %cst_67 : f32 to vector<1x256xf32>
    %276 = vector.broadcast %3 : f32 to vector<1x256xf32>
    %277 = arith.mulf %276, %116 : vector<1x256xf32>
    %278 = arith.addf %275, %277 : vector<1x256xf32>
    %279 = vector.broadcast %10 : f32 to vector<1x256xf32>
    %280 = arith.mulf %279, %117 : vector<1x256xf32>
    %281 = arith.addf %278, %280 : vector<1x256xf32>
    %282 = vector.broadcast %17 : f32 to vector<1x256xf32>
    %283 = arith.mulf %282, %118 : vector<1x256xf32>
    %284 = arith.addf %281, %283 : vector<1x256xf32>
    %285 = vector.broadcast %24 : f32 to vector<1x256xf32>
    %286 = arith.mulf %285, %119 : vector<1x256xf32>
    %287 = arith.addf %284, %286 : vector<1x256xf32>
    %288 = vector.broadcast %31 : f32 to vector<1x256xf32>
    %289 = arith.mulf %288, %120 : vector<1x256xf32>
    %290 = arith.addf %287, %289 : vector<1x256xf32>
    %291 = vector.broadcast %38 : f32 to vector<1x256xf32>
    %292 = arith.mulf %291, %121 : vector<1x256xf32>
    %293 = arith.addf %290, %292 : vector<1x256xf32>
    %294 = vector.broadcast %45 : f32 to vector<1x256xf32>
    %295 = arith.mulf %294, %122 : vector<1x256xf32>
    %296 = arith.addf %293, %295 : vector<1x256xf32>
    %297 = vector.broadcast %52 : f32 to vector<1x256xf32>
    %298 = arith.mulf %297, %123 : vector<1x256xf32>
    %299 = arith.addf %296, %298 : vector<1x256xf32>
    %300 = vector.broadcast %59 : f32 to vector<1x256xf32>
    %301 = arith.mulf %300, %124 : vector<1x256xf32>
    %302 = arith.addf %299, %301 : vector<1x256xf32>
    %303 = vector.broadcast %66 : f32 to vector<1x256xf32>
    %304 = arith.mulf %303, %125 : vector<1x256xf32>
    %305 = arith.addf %302, %304 : vector<1x256xf32>
    %306 = vector.broadcast %73 : f32 to vector<1x256xf32>
    %307 = arith.mulf %306, %126 : vector<1x256xf32>
    %308 = arith.addf %305, %307 : vector<1x256xf32>
    %309 = vector.broadcast %80 : f32 to vector<1x256xf32>
    %310 = arith.mulf %309, %127 : vector<1x256xf32>
    %311 = arith.addf %308, %310 : vector<1x256xf32>
    %312 = vector.broadcast %87 : f32 to vector<1x256xf32>
    %313 = arith.mulf %312, %128 : vector<1x256xf32>
    %314 = arith.addf %311, %313 : vector<1x256xf32>
    %315 = vector.broadcast %94 : f32 to vector<1x256xf32>
    %316 = arith.mulf %315, %129 : vector<1x256xf32>
    %317 = arith.addf %314, %316 : vector<1x256xf32>
    %c0_68 = arith.constant 0 : index
    %c3_69 = arith.constant 3 : index
    %318 = vector.load %arg6[%c0_68, %c3_69] : memref<1x262xf32, #tpu.memory_space<vmem>>, vector<1x256xf32>
    tpu.vector_store %arg6[%c0_68, %c3_69], %317 {strides = array<i32>} : memref<1x262xf32, #tpu.memory_space<vmem>>, vector<1x256xf32>,
    %c3_70 = arith.constant 3 : index
    %c0_71 = arith.constant 0 : index
    %319 = vector.load %arg2[%c3_70, %c0_71] : memref<7x256xf32, #tpu.memory_space<vmem>>, vector<1x256xf32>
    %c0_72 = arith.constant 0 : index
    %c3_73 = arith.constant 3 : index
    %320 = vector.load %arg6[%c0_72, %c3_73] : memref<1x262xf32, #tpu.memory_space<vmem>>, vector<1x256xf32>
    %321 = arith.mulf %319, %320 : vector<1x256xf32>
    %322 = arith.addf %274, %321 : vector<1x256xf32>
    %cst_74 = arith.constant 0.000000e+00 : f32
    %323 = vector.broadcast %cst_74 : f32 to vector<1x256xf32>
    %324 = vector.broadcast %4 : f32 to vector<1x256xf32>
    %325 = arith.mulf %324, %116 : vector<1x256xf32>
    %326 = arith.addf %323, %325 : vector<1x256xf32>
    %327 = vector.broadcast %11 : f32 to vector<1x256xf32>
    %328 = arith.mulf %327, %117 : vector<1x256xf32>
    %329 = arith.addf %326, %328 : vector<1x256xf32>
    %330 = vector.broadcast %18 : f32 to vector<1x256xf32>
    %331 = arith.mulf %330, %118 : vector<1x256xf32>
    %332 = arith.addf %329, %331 : vector<1x256xf32>
    %333 = vector.broadcast %25 : f32 to vector<1x256xf32>
    %334 = arith.mulf %333, %119 : vector<1x256xf32>
    %335 = arith.addf %332, %334 : vector<1x256xf32>
    %336 = vector.broadcast %32 : f32 to vector<1x256xf32>
    %337 = arith.mulf %336, %120 : vector<1x256xf32>
    %338 = arith.addf %335, %337 : vector<1x256xf32>
    %339 = vector.broadcast %39 : f32 to vector<1x256xf32>
    %340 = arith.mulf %339, %121 : vector<1x256xf32>
    %341 = arith.addf %338, %340 : vector<1x256xf32>
    %342 = vector.broadcast %46 : f32 to vector<1x256xf32>
    %343 = arith.mulf %342, %122 : vector<1x256xf32>
    %344 = arith.addf %341, %343 : vector<1x256xf32>
    %345 = vector.broadcast %53 : f32 to vector<1x256xf32>
    %346 = arith.mulf %345, %123 : vector<1x256xf32>
    %347 = arith.addf %344, %346 : vector<1x256xf32>
    %348 = vector.broadcast %60 : f32 to vector<1x256xf32>
    %349 = arith.mulf %348, %124 : vector<1x256xf32>
    %350 = arith.addf %347, %349 : vector<1x256xf32>
    %351 = vector.broadcast %67 : f32 to vector<1x256xf32>
    %352 = arith.mulf %351, %125 : vector<1x256xf32>
    %353 = arith.addf %350, %352 : vector<1x256xf32>
    %354 = vector.broadcast %74 : f32 to vector<1x256xf32>
    %355 = arith.mulf %354, %126 : vector<1x256xf32>
    %356 = arith.addf %353, %355 : vector<1x256xf32>
    %357 = vector.broadcast %81 : f32 to vector<1x256xf32>
    %358 = arith.mulf %357, %127 : vector<1x256xf32>
    %359 = arith.addf %356, %358 : vector<1x256xf32>
    %360 = vector.broadcast %88 : f32 to vector<1x256xf32>
    %361 = arith.mulf %360, %128 : vector<1x256xf32>
    %362 = arith.addf %359, %361 : vector<1x256xf32>
    %363 = vector.broadcast %95 : f32 to vector<1x256xf32>
    %364 = arith.mulf %363, %129 : vector<1x256xf32>
    %365 = arith.addf %362, %364 : vector<1x256xf32>
    %c0_75 = arith.constant 0 : index
    %c3_76 = arith.constant 3 : index
    %366 = vector.load %arg6[%c0_75, %c3_76] : memref<1x262xf32, #tpu.memory_space<vmem>>, vector<1x256xf32>
    tpu.vector_store %arg6[%c0_75, %c3_76], %365 {strides = array<i32>} : memref<1x262xf32, #tpu.memory_space<vmem>>, vector<1x256xf32>,
    %c4_77 = arith.constant 4 : index
    %c0_78 = arith.constant 0 : index
    %367 = vector.load %arg2[%c4_77, %c0_78] : memref<7x256xf32, #tpu.memory_space<vmem>>, vector<1x256xf32>
    %c0_79 = arith.constant 0 : index
    %c4_80 = arith.constant 4 : index
    %368 = vector.load %arg6[%c0_79, %c4_80] : memref<1x262xf32, #tpu.memory_space<vmem>>, vector<1x256xf32>
    %369 = arith.mulf %367, %368 : vector<1x256xf32>
    %370 = arith.addf %322, %369 : vector<1x256xf32>
    %cst_81 = arith.constant 0.000000e+00 : f32
    %371 = vector.broadcast %cst_81 : f32 to vector<1x256xf32>
    %372 = vector.broadcast %5 : f32 to vector<1x256xf32>
    %373 = arith.mulf %372, %116 : vector<1x256xf32>
    %374 = arith.addf %371, %373 : vector<1x256xf32>
    %375 = vector.broadcast %12 : f32 to vector<1x256xf32>
    %376 = arith.mulf %375, %117 : vector<1x256xf32>
    %377 = arith.addf %374, %376 : vector<1x256xf32>
    %378 = vector.broadcast %19 : f32 to vector<1x256xf32>
    %379 = arith.mulf %378, %118 : vector<1x256xf32>
    %380 = arith.addf %377, %379 : vector<1x256xf32>
    %381 = vector.broadcast %26 : f32 to vector<1x256xf32>
    %382 = arith.mulf %381, %119 : vector<1x256xf32>
    %383 = arith.addf %380, %382 : vector<1x256xf32>
    %384 = vector.broadcast %33 : f32 to vector<1x256xf32>
    %385 = arith.mulf %384, %120 : vector<1x256xf32>
    %386 = arith.addf %383, %385 : vector<1x256xf32>
    %387 = vector.broadcast %40 : f32 to vector<1x256xf32>
    %388 = arith.mulf %387, %121 : vector<1x256xf32>
    %389 = arith.addf %386, %388 : vector<1x256xf32>
    %390 = vector.broadcast %47 : f32 to vector<1x256xf32>
    %391 = arith.mulf %390, %122 : vector<1x256xf32>
    %392 = arith.addf %389, %391 : vector<1x256xf32>
    %393 = vector.broadcast %54 : f32 to vector<1x256xf32>
    %394 = arith.mulf %393, %123 : vector<1x256xf32>
    %395 = arith.addf %392, %394 : vector<1x256xf32>
    %396 = vector.broadcast %61 : f32 to vector<1x256xf32>
    %397 = arith.mulf %396, %124 : vector<1x256xf32>
    %398 = arith.addf %395, %397 : vector<1x256xf32>
    %399 = vector.broadcast %68 : f32 to vector<1x256xf32>
    %400 = arith.mulf %399, %125 : vector<1x256xf32>
    %401 = arith.addf %398, %400 : vector<1x256xf32>
    %402 = vector.broadcast %75 : f32 to vector<1x256xf32>
    %403 = arith.mulf %402, %126 : vector<1x256xf32>
    %404 = arith.addf %401, %403 : vector<1x256xf32>
    %405 = vector.broadcast %82 : f32 to vector<1x256xf32>
    %406 = arith.mulf %405, %127 : vector<1x256xf32>
    %407 = arith.addf %404, %406 : vector<1x256xf32>
    %408 = vector.broadcast %89 : f32 to vector<1x256xf32>
    %409 = arith.mulf %408, %128 : vector<1x256xf32>
    %410 = arith.addf %407, %409 : vector<1x256xf32>
    %411 = vector.broadcast %96 : f32 to vector<1x256xf32>
    %412 = arith.mulf %411, %129 : vector<1x256xf32>
    %413 = arith.addf %410, %412 : vector<1x256xf32>
    %c0_82 = arith.constant 0 : index
    %c3_83 = arith.constant 3 : index
    %414 = vector.load %arg6[%c0_82, %c3_83] : memref<1x262xf32, #tpu.memory_space<vmem>>, vector<1x256xf32>
    tpu.vector_store %arg6[%c0_82, %c3_83], %413 {strides = array<i32>} : memref<1x262xf32, #tpu.memory_space<vmem>>, vector<1x256xf32>,
    %c5_84 = arith.constant 5 : index
    %c0_85 = arith.constant 0 : index
    %415 = vector.load %arg2[%c5_84, %c0_85] : memref<7x256xf32, #tpu.memory_space<vmem>>, vector<1x256xf32>
    %c0_86 = arith.constant 0 : index
    %c5_87 = arith.constant 5 : index
    %416 = vector.load %arg6[%c0_86, %c5_87] : memref<1x262xf32, #tpu.memory_space<vmem>>, vector<1x256xf32>
    %417 = arith.mulf %415, %416 : vector<1x256xf32>
    %418 = arith.addf %370, %417 : vector<1x256xf32>
    %cst_88 = arith.constant 0.000000e+00 : f32
    %419 = vector.broadcast %cst_88 : f32 to vector<1x256xf32>
    %420 = vector.broadcast %6 : f32 to vector<1x256xf32>
    %421 = arith.mulf %420, %116 : vector<1x256xf32>
    %422 = arith.addf %419, %421 : vector<1x256xf32>
    %423 = vector.broadcast %13 : f32 to vector<1x256xf32>
    %424 = arith.mulf %423, %117 : vector<1x256xf32>
    %425 = arith.addf %422, %424 : vector<1x256xf32>
    %426 = vector.broadcast %20 : f32 to vector<1x256xf32>
    %427 = arith.mulf %426, %118 : vector<1x256xf32>
    %428 = arith.addf %425, %427 : vector<1x256xf32>
    %429 = vector.broadcast %27 : f32 to vector<1x256xf32>
    %430 = arith.mulf %429, %119 : vector<1x256xf32>
    %431 = arith.addf %428, %430 : vector<1x256xf32>
    %432 = vector.broadcast %34 : f32 to vector<1x256xf32>
    %433 = arith.mulf %432, %120 : vector<1x256xf32>
    %434 = arith.addf %431, %433 : vector<1x256xf32>
    %435 = vector.broadcast %41 : f32 to vector<1x256xf32>
    %436 = arith.mulf %435, %121 : vector<1x256xf32>
    %437 = arith.addf %434, %436 : vector<1x256xf32>
    %438 = vector.broadcast %48 : f32 to vector<1x256xf32>
    %439 = arith.mulf %438, %122 : vector<1x256xf32>
    %440 = arith.addf %437, %439 : vector<1x256xf32>
    %441 = vector.broadcast %55 : f32 to vector<1x256xf32>
    %442 = arith.mulf %441, %123 : vector<1x256xf32>
    %443 = arith.addf %440, %442 : vector<1x256xf32>
    %444 = vector.broadcast %62 : f32 to vector<1x256xf32>
    %445 = arith.mulf %444, %124 : vector<1x256xf32>
    %446 = arith.addf %443, %445 : vector<1x256xf32>
    %447 = vector.broadcast %69 : f32 to vector<1x256xf32>
    %448 = arith.mulf %447, %125 : vector<1x256xf32>
    %449 = arith.addf %446, %448 : vector<1x256xf32>
    %450 = vector.broadcast %76 : f32 to vector<1x256xf32>
    %451 = arith.mulf %450, %126 : vector<1x256xf32>
    %452 = arith.addf %449, %451 : vector<1x256xf32>
    %453 = vector.broadcast %83 : f32 to vector<1x256xf32>
    %454 = arith.mulf %453, %127 : vector<1x256xf32>
    %455 = arith.addf %452, %454 : vector<1x256xf32>
    %456 = vector.broadcast %90 : f32 to vector<1x256xf32>
    %457 = arith.mulf %456, %128 : vector<1x256xf32>
    %458 = arith.addf %455, %457 : vector<1x256xf32>
    %459 = vector.broadcast %97 : f32 to vector<1x256xf32>
    %460 = arith.mulf %459, %129 : vector<1x256xf32>
    %461 = arith.addf %458, %460 : vector<1x256xf32>
    %c0_89 = arith.constant 0 : index
    %c3_90 = arith.constant 3 : index
    %462 = vector.load %arg6[%c0_89, %c3_90] : memref<1x262xf32, #tpu.memory_space<vmem>>, vector<1x256xf32>
    tpu.vector_store %arg6[%c0_89, %c3_90], %461 {strides = array<i32>} : memref<1x262xf32, #tpu.memory_space<vmem>>, vector<1x256xf32>,
    %c6_91 = arith.constant 6 : index
    %c0_92 = arith.constant 0 : index
    %463 = vector.load %arg2[%c6_91, %c0_92] : memref<7x256xf32, #tpu.memory_space<vmem>>, vector<1x256xf32>
    %c0_93 = arith.constant 0 : index
    %c6_94 = arith.constant 6 : index
    %464 = vector.load %arg6[%c0_93, %c6_94] : memref<1x262xf32, #tpu.memory_space<vmem>>, vector<1x256xf32>
    %465 = arith.mulf %463, %464 : vector<1x256xf32>
    %466 = arith.addf %418, %465 : vector<1x256xf32>
    %467 = arith.negf %466 : vector<1x256xf32>
    %468 = math.exp %467 : vector<1x256xf32>
    %cst_95 = arith.constant 1.000000e+00 : f32
    %469 = vector.broadcast %cst_95 : f32 to vector<1x256xf32>
    %470 = arith.addf %469, %468 : vector<1x256xf32>
    %471 = arith.divf %469, %470 : vector<1x256xf32>
    %c0_96 = arith.constant 0 : index
    %c0_97 = arith.constant 0 : index
    %c0_98 = arith.constant 0 : index
    %472 = vector.load %arg3[%c0_96, %c0_97, %c0_98] : memref<1x4x256xf32, #tpu.memory_space<vmem>>, vector<1x4x256xf32>
    %473 = vector.shape_cast %472 : vector<1x4x256xf32> to vector<4x256xf32>
    %474 = vector.broadcast %471 : vector<1x256xf32> to vector<4x256xf32>
    %475 = arith.mulf %473, %474 : vector<4x256xf32>
    %c0_99 = arith.constant 0 : index
    %c0_100 = arith.constant 0 : index
    %c0_101 = arith.constant 0 : index
    %476 = vector.load %arg4[%c0_99, %c0_100, %c0_101] : memref<1x4x256xf32, #tpu.memory_space<vmem>>, vector<1x4x256xf32>
    %477 = vector.shape_cast %476 : vector<1x4x256xf32> to vector<4x256xf32>
    %478 = vector.shape_cast %475 : vector<4x256xf32> to vector<1x4x256xf32>
    tpu.vector_store %arg4[%c0_99, %c0_100, %c0_101], %478 {strides = array<i32>} : memref<1x4x256xf32, #tpu.memory_space<vmem>>, vector<1x4x256xf32>,
    return
  }
  func.func @transform_0(%arg0: i32) -> i32 {
    %c0_i32 = arith.constant 0 : i32
    %c0_i32_0 = arith.constant 0 : i32
    return %c0_i32 : i32
  }
  func.func @transform_1(%arg0: i32) -> (i32, i32) {
    %c0_i32 = arith.constant 0 : i32
    %c0_i32_0 = arith.constant 0 : i32
    %c0_i32_1 = arith.constant 0 : i32
    return %c0_i32, %c0_i32_0 : i32, i32
  }
  func.func @transform_2(%arg0: i32) -> (i32, i32, i32) {
    %c0_i32 = arith.constant 0 : i32
    %c0_i32_0 = arith.constant 0 : i32
    %c0_i32_1 = arith.constant 0 : i32
    return %arg0, %c0_i32, %c0_i32_0 : i32, i32, i32
  }
  func.func @transform_3(%arg0: i32) -> (i32, i32, i32) {
    %c0_i32 = arith.constant 0 : i32
    %c0_i32_0 = arith.constant 0 : i32
    %c0_i32_1 = arith.constant 0 : i32
    return %arg0, %c0_i32, %c0_i32_0 : i32, i32, i32
  }
}

</mosaic_0001>

<llo_original>
// kernel: spatial_attention.1
$region0: #{spatial_attention.1}
  #allocation0 [shape = 'u32[]', space=smem, size = 0x4, offset = 0x4, fixed_abs, tag = 'smem constant byte address 0x4 - core index']
  #allocation1 [shape = 'u32[144,128]{1,0:T(1,128)}', space=vmem, size = 0x12000, scoped, tag = 'internal scratch']
  #allocation2 [shape = 'f32[2,352]{1,0:T(2,128)}', space=vmem, size = 0xc00, scoped, tag = 'scratch operand']
  #allocation3 [shape = 'f32[1,262]{1,0:T(1,128)}', space=vmem, size = 0x600, scoped, tag = 'scratch operand']
  %s0 = inlined_call_operand.vmem [shape: f32[98], index: 0, kind: input, shape index: {}]
  %s1 = inlined_call_operand.vmem [shape: f32[7,256], index: 1, kind: input, shape index: {}]
  %s2 = inlined_call_operand.vmem [shape: f32[2,4,256], index: 2, kind: input, shape index: {}]
  %s3 = inlined_call_operand.vmem [shape: f32[2,4,256], index: 3, kind: output, shape index: {}]
  %s4 = sld [smem:[#allocation0]]
  $region49: #{spatial_attention.1} parent=0
    _
  %s6 = ssub.s32 1, %s4
  %s7 = scalar_select 0, %s6, %s4
  $region1: #{spatial_attention.1} parent=0
    #allocation4 [shape = 'u8[512]{0}', space=smem, size = 0x200, scoped, tag = 'input window, operand 0, single buffered']
    #allocation5 [shape = 's32[2]{0}', space=sflag, size = 0x8, scoped, tag = 'scoped memory for spatial_attention.1']
    %8 = vsyncpa [#allocation5], 0
    loop: start=0, step=1, limit=4
    $region2: #{spatial_attention.1} parent=1 // loop_pre_header
      _
    $region3: #{spatial_attention.1} parent=1 // loop_header
      %s10 = sphi 0, %s14
      %p11 = scmp.ge.s32.totalorder %s10, 4
      %s18 = sphi 0, %s18
      %s20 = sphi 0, %s18
      %s21 = sphi 0, %s20
      %s35 = sphi 0, %s21
      %s39 = sphi 0, %s39
      %s41 = sphi 0, %s39
      %s42 = sphi 0, %s41
      %s56 = sphi 0, %s42
      %s62 = sphi 0, %s64
      %s65 = sphi 0, %s62
      %s66 = sphi 0, %s65
      %s82 = sphi 0, %s66
      %s88 = sphi 0, %s90
      %s91 = sphi 0, %s88
      %s92 = sphi 0, %s91
      %s108 = sphi 0, %s92
    $region4: #{spatial_attention.1} parent=1 // loop_header_branch
      %13 = sbr.rel (%p11) target = $region8
    $region5: #{spatial_attention.1} parent=1 // loop_body
      %s15 = ssub.s32 %s10, 1
      %s16 = ssub.s32 %s10, 2
      %s17 = sadd.s32 %s10, 1
      %s19 = sadd.s32 %s18, 1
      %p22 = scmp.eq.s32.totalorder %s10, 1
      %p23 = scmp.ne.s32.totalorder %s18, %s20
      %p24 = scmp.eq.s32.totalorder %s10, 0
      %p25 = por %p23, %p24
      %p26 = scmp.ne.s32.totalorder %s18, %s20
      %p27 = scmp.eq.s32.totalorder %s15, 1
      %p28 = por %p26, %p27
      %p29 = scmp.ne.s32.totalorder %s20, %s21
      %p30 = scmp.eq.s32.totalorder %s15, 0
      %p31 = por %p29, %p30
      %p32 = scmp.ne.s32.totalorder %s20, %s21
      %p33 = scmp.eq.s32.totalorder %s16, 1
      %p34 = por %p32, %p33
      %p36 = scmp.ne.s32.totalorder %s21, %s35
      %p37 = scmp.eq.s32.totalorder %s16, 0
      %p38 = por %p36, %p37
      %s40 = sadd.s32 %s39, 1
      %p43 = scmp.eq.s32.totalorder %s10, 1
      %p44 = scmp.ne.s32.totalorder %s39, %s41
      %p45 = scmp.eq.s32.totalorder %s10, 0
      %p46 = por %p44, %p45
      %p47 = scmp.ne.s32.totalorder %s39, %s41
      %p48 = scmp.eq.s32.totalorder %s15, 1
      %p49 = por %p47, %p48
      %p50 = scmp.ne.s32.totalorder %s41, %s42
      %p51 = scmp.eq.s32.totalorder %s15, 0
      %p52 = por %p50, %p51
      %p53 = scmp.ne.s32.totalorder %s41, %s42
      %p54 = scmp.eq.s32.totalorder %s16, 1
      %p55 = por %p53, %p54
      %p57 = scmp.ne.s32.totalorder %s42, %s56
      %p58 = scmp.eq.s32.totalorder %s16, 0
      %p59 = por %p57, %p58
      %s60 = ssub.s32 %s10, %s17
      %p61 = scmp.eq.s32.totalorder %s60, 0
      %s63 = sadd.s32 %s62, 1
      %s64 = scalar_select %p61, %s62, %s63
      %p67 = pneg %p61
      %p68 = scmp.eq.s32.totalorder %s10, 1
      %p69 = por %p67, %p68
      %p70 = scmp.ne.s32.totalorder %s62, %s65
      %p71 = scmp.eq.s32.totalorder %s10, 0
      %p72 = por %p70, %p71
      %p73 = scmp.ne.s32.totalorder %s62, %s65
      %p74 = scmp.eq.s32.totalorder %s15, 1
      %p75 = por %p73, %p74
      %p76 = scmp.ne.s32.totalorder %s65, %s66
      %p77 = scmp.eq.s32.totalorder %s15, 0
      %p78 = por %p76, %p77
      %p79 = scmp.ne.s32.totalorder %s65, %s66
      %p80 = scmp.eq.s32.totalorder %s16, 1
      %p81 = por %p79, %p80
      %p83 = scmp.ne.s32.totalorder %s66, %s82
      %p84 = scmp.eq.s32.totalorder %s16, 0
      %p85 = por %p83, %p84
      %s86 = ssub.s32 %s10, %s17
      %p87 = scmp.eq.s32.totalorder %s86, 0
      %s89 = sadd.s32 %s88, 1
      %s90 = scalar_select %p87, %s88, %s89
      %p93 = pneg %p87
      %p94 = scmp.eq.s32.totalorder %s10, 1
      %p95 = por %p93, %p94
      %p96 = scmp.ne.s32.totalorder %s88, %s91
      %p97 = scmp.eq.s32.totalorder %s10, 0
      %p98 = por %p96, %p97
      %p99 = scmp.ne.s32.totalorder %s88, %s91
      %p100 = scmp.eq.s32.totalorder %s15, 1
      %p101 = por %p99, %p100
      %p102 = scmp.ne.s32.totalorder %s91, %s92
      %p103 = scmp.eq.s32.totalorder %s15, 0
      %p104 = por %p102, %p103
      %p105 = scmp.ne.s32.totalorder %s91, %s92
      %p106 = scmp.eq.s32.totalorder %s16, 1
      %p107 = por %p105, %p106
      %p109 = scmp.ne.s32.totalorder %s92, %s108
      %p110 = scmp.eq.s32.totalorder %s16, 0
      %p111 = por %p109, %p110
      %p112 = scmp.le.s32.totalorder 1, %s10
      %p113 = scmp.lt.s32.totalorder %s10, 3
      %p114 = pnand %p112, %p113
      %p115 = pneg %p114
      // Predicated region
      $region9: #{spatial_attention.1} parent=5 // pred_check
        _
      $region10: #{spatial_attention.1} parent=5 // pred_check_branch
        %117 = sbr.rel (%p114) target = $region12
      $region11: #{spatial_attention.1} parent=5 // pred_region
        %s118 = ssub.s32 %s10, 1
        // Predicated region
        $region13: #{spatial_attention.1} parent=11 // pred_check
          %p119 = pneg %p31
        $region14: #{spatial_attention.1} parent=11 // pred_check_branch
          %121 = sbr.rel (%p119) target = $region16
        $region15: #{spatial_attention.1} parent=11 // pred_region
          %s123 = ssub.s32 16, 16
          %124 = vsyncadd [#allocation5], %s123
          %s126 = sshll.u32 %s0, 4
          %s127 = int_to_ptr.vmem [resolvable:$true] %s126
          %129 = dma.vmem_to_smem %s127, 16, [#allocation4], [#allocation5]
        $region16: #{spatial_attention.1} parent=11 // pred_fallthru
          _
        // Predicated region
        $region17: #{spatial_attention.1} parent=11 // pred_check
          %p130 = pneg %p52
        $region18: #{spatial_attention.1} parent=11 // pred_check_branch
          %132 = sbr.rel (%p130) target = $region20
        $region19: #{spatial_attention.1} parent=11 // pred_region
          _
        $region20: #{spatial_attention.1} parent=11 // pred_fallthru
          _
      $region12: #{spatial_attention.1} parent=5 // pred_fallthru
        _
      %p133 = scmp.lt.s32.totalorder %s10, 2
      // Predicated region
      $region21: #{spatial_attention.1} parent=5 // pred_check
        %p134 = pneg %p133
      $region22: #{spatial_attention.1} parent=5 // pred_check_branch
        %136 = sbr.rel (%p134) target = $region24
      $region23: #{spatial_attention.1} parent=5 // pred_region
        // Predicated region
        $region25: #{spatial_attention.1} parent=23 // pred_check
          %p137 = pneg %p72
        $region26: #{spatial_attention.1} parent=23 // pred_check_branch
          %139 = sbr.rel (%p137) target = $region28
        $region27: #{spatial_attention.1} parent=23 // pred_region
          %p140 = scmp.lt.s32.totalorder %s10, 1
          %s141 = scalar_select %p140, %s10, 1
          %s142 = smul.addr %s141, 2
          %s143 = smul.addr %s142, 4
          %s144 = scalar_lea.vmem %s2, %s143
        $region28: #{spatial_attention.1} parent=23 // pred_fallthru
          _
      $region24: #{spatial_attention.1} parent=5 // pred_fallthru
        _
      %p145 = scmp.le.s32.totalorder 1, %s10
      %p146 = scmp.lt.s32.totalorder %s10, 3
      %p147 = pnand %p145, %p146
      %p148 = pneg %p147
      // Predicated region
      $region29: #{spatial_attention.1} parent=5 // pred_check
        _
      $region30: #{spatial_attention.1} parent=5 // pred_check_branch
        %150 = sbr.rel (%p147) target = $region32
      $region31: #{spatial_attention.1} parent=5 // pred_region
        %s151 = ssub.s32 %s10, 1
        // Predicated region
        $region33: #{spatial_attention.1} parent=31 // pred_check
          %p152 = pneg %p31
        $region34: #{spatial_attention.1} parent=31 // pred_check_branch
          %154 = sbr.rel (%p152) target = $region36
        $region35: #{spatial_attention.1} parent=31 // pred_region
          %155 = dma.done [#allocation5], 16
        $region36: #{spatial_attention.1} parent=31 // pred_fallthru
          _
        %156 = sfence
        %p157 = pneg %p31
        %p158 = pneg %p28
        %p159 = pneg %p52
        %p160 = pneg %p49
        %p161 = scmp.lt.s32.totalorder %s15, 1
        %s162 = scalar_select %p161, %s15, 1
        %s163 = smul.addr %s162, 2
        %s164 = smul.addr %s163, 4
        %s165 = scalar_lea.vmem %s2, %s164
        %p166 = pneg %p78
        %p167 = pneg %p75
        %p168 = pneg %p104
        %p169 = pneg %p101
        %p170 = scmp.lt.s32.totalorder %s15, 1
        %s171 = scalar_select %p170, %s15, 1
        %s172 = smul.addr %s171, 2
        %s173 = smul.addr %s172, 4
        %s174 = scalar_lea.vmem %s3, %s173
        %p175 = scmp.lt.s32.totalorder %s15, 1
        %s176 = scalar_select %p175, %s15, 1
        %s177 = smul.addr %s176, 2
        %s178 = smul.addr %s177, 4
        %s179 = scalar_lea.vmem %s2, %s178
        %p180 = scmp.lt.s32.totalorder %s15, 1
        %s181 = scalar_select %p180, %s15, 1
        %s182 = smul.addr %s181, 2
        %s183 = smul.addr %s182, 4
        %s184 = scalar_lea.vmem %s3, %s183
        %s185 = sld [smem:[#allocation4]]
        %s186 = sld [smem:[#allocation4 + $0x1]]
        %s187 = sld [smem:[#allocation4 + $0x2]]
        %s188 = sld [smem:[#allocation4 + $0x3]]
        %s189 = sld [smem:[#allocation4 + $0x4]]
        %s190 = sld [smem:[#allocation4 + $0x5]]
        %s191 = sld [smem:[#allocation4 + $0x6]]
        %s192 = sld [smem:[#allocation4 + $0x7]]
        %s193 = sld [smem:[#allocation4 + $0x8]]
        %s194 = sld [smem:[#allocation4 + $0x9]]
        %s195 = sld [smem:[#allocation4 + $0xa]]
        %s196 = sld [smem:[#allocation4 + $0xb]]
        %s197 = sld [smem:[#allocation4 + $0xc]]
        %s198 = sld [smem:[#allocation4 + $0xd]]
        %s199 = sld [smem:[#allocation4 + $0xe]]
        %s200 = sld [smem:[#allocation4 + $0xf]]
        %s201 = sld [smem:[#allocation4 + $0x10]]
        %s202 = sld [smem:[#allocation4 + $0x11]]
        %s203 = sld [smem:[#allocation4 + $0x12]]
        %s204 = sld [smem:[#allocation4 + $0x13]]
        %s205 = sld [smem:[#allocation4 + $0x14]]
        %s206 = sld [smem:[#allocation4 + $0x15]]
        %s207 = sld [smem:[#allocation4 + $0x16]]
        %s208 = sld [smem:[#allocation4 + $0x17]]
        %s209 = sld [smem:[#allocation4 + $0x18]]
        %s210 = sld [smem:[#allocation4 + $0x19]]
        %s211 = sld [smem:[#allocation4 + $0x1a]]
        %s212 = sld [smem:[#allocation4 + $0x1b]]
        %s213 = sld [smem:[#allocation4 + $0x1c]]
        %s214 = sld [smem:[#allocation4 + $0x1d]]
        %s215 = sld [smem:[#allocation4 + $0x1e]]
        %s216 = sld [smem:[#allocation4 + $0x1f]]
        %s217 = sld [smem:[#allocation4 + $0x20]]
        %s218 = sld [smem:[#allocation4 + $0x21]]
        %s219 = sld [smem:[#allocation4 + $0x22]]
        %s220 = sld [smem:[#allocation4 + $0x23]]
        %s221 = sld [smem:[#allocation4 + $0x24]]
        %s222 = sld [smem:[#allocation4 + $0x25]]
        %s223 = sld [smem:[#allocation4 + $0x26]]
        %s224 = sld [smem:[#allocation4 + $0x27]]
        %s225 = sld [smem:[#allocation4 + $0x28]]
        %s226 = sld [smem:[#allocation4 + $0x29]]
        %s227 = sld [smem:[#allocation4 + $0x2a]]
        %s228 = sld [smem:[#allocation4 + $0x2b]]
        %s229 = sld [smem:[#allocation4 + $0x2c]]
        %s230 = sld [smem:[#allocation4 + $0x2d]]
        %s231 = sld [smem:[#allocation4 + $0x2e]]
        %s232 = sld [smem:[#allocation4 + $0x2f]]
        %s233 = sld [smem:[#allocation4 + $0x30]]
        %s234 = sld [smem:[#allocation4 + $0x31]]
        %s235 = sld [smem:[#allocation4 + $0x32]]
        %s236 = sld [smem:[#allocation4 + $0x33]]
        %s237 = sld [smem:[#allocation4 + $0x34]]
        %s238 = sld [smem:[#allocation4 + $0x35]]
        %s239 = sld [smem:[#allocation4 + $0x36]]
        %s240 = sld [smem:[#allocation4 + $0x37]]
        %s241 = sld [smem:[#allocation4 + $0x38]]
        %s242 = sld [smem:[#allocation4 + $0x39]]
        %s243 = sld [smem:[#allocation4 + $0x3a]]
        %s244 = sld [smem:[#allocation4 + $0x3b]]
        %s245 = sld [smem:[#allocation4 + $0x3c]]
        %s246 = sld [smem:[#allocation4 + $0x3d]]
        %s247 = sld [smem:[#allocation4 + $0x3e]]
        %s248 = sld [smem:[#allocation4 + $0x3f]]
        %s249 = sld [smem:[#allocation4 + $0x40]]
        %s250 = sld [smem:[#allocation4 + $0x41]]
        %s251 = sld [smem:[#allocation4 + $0x42]]
        %s252 = sld [smem:[#allocation4 + $0x43]]
        %s253 = sld [smem:[#allocation4 + $0x44]]
        %s254 = sld [smem:[#allocation4 + $0x45]]
        %s255 = sld [smem:[#allocation4 + $0x46]]
        %s256 = sld [smem:[#allocation4 + $0x47]]
        %s257 = sld [smem:[#allocation4 + $0x48]]
        %s258 = sld [smem:[#allocation4 + $0x49]]
        %s259 = sld [smem:[#allocation4 + $0x4a]]
        %s260 = sld [smem:[#allocation4 + $0x4b]]
        %s261 = sld [smem:[#allocation4 + $0x4c]]
        %s262 = sld [smem:[#allocation4 + $0x4d]]
        %s263 = sld [smem:[#allocation4 + $0x4e]]
        %s264 = sld [smem:[#allocation4 + $0x4f]]
        %s265 = sld [smem:[#allocation4 + $0x50]]
        %s266 = sld [smem:[#allocation4 + $0x51]]
        %s267 = sld [smem:[#allocation4 + $0x52]]
        %s268 = sld [smem:[#allocation4 + $0x53]]
        %s269 = sld [smem:[#allocation4 + $0x54]]
        %s270 = sld [smem:[#allocation4 + $0x55]]
        %s271 = sld [smem:[#allocation4 + $0x56]]
        %s272 = sld [smem:[#allocation4 + $0x57]]
        %s273 = sld [smem:[#allocation4 + $0x58]]
        %s274 = sld [smem:[#allocation4 + $0x59]]
        %s275 = sld [smem:[#allocation4 + $0x5a]]
        %s276 = sld [smem:[#allocation4 + $0x5b]]
        %s277 = sld [smem:[#allocation4 + $0x5c]]
        %s278 = sld [smem:[#allocation4 + $0x5d]]
        %s279 = sld [smem:[#allocation4 + $0x5e]]
        %s280 = sld [smem:[#allocation4 + $0x5f]]
        %s281 = sld [smem:[#allocation4 + $0x60]]
        %s282 = sld [smem:[#allocation4 + $0x61]]
        %vm283 = vcmask 1041408
        %vm284 = vcmask 1043458
        %vm285 = vmor %vm284, %vm283
        %vm286 = vcmask 783364
        %vm287 = vmor %vm286, %vm285
        %288 = vst.msk [vmem:[#allocation2] sm:$0x3f] %vm287, 0.0
        %v289 = vlaneseq
        %vm290 = vcmp.ge.s32.totalorder %v289, 0
        %vm291 = vcmp.lt.s32.totalorder %v289, 262
        %vm292 = vmand %vm290, %vm291
        %293 = vst.msk [vmem:[#allocation3] sm:$0x7] %vm292, 0.0
        %v294 = vld [vmem:[%s179] sm:$0xff]
        %v296 = vcombine.high %v294, %v294
        %vm298 = vcmask 1043456
        %v299 = vsel %vm298, %v294, 0.0
        %v300 = vrot.slane %v299, 4
        %v301 = vadd.f32 %v299, %v300
        %v302 = vrot.slane %v301, 2
        %v303 = vadd.f32 %v301, %v302
        %v304 = vrot.slane %v303, 1
        %v305 = vadd.f32 %v303, %v304
        %v306 = vsel %vm298, %v296, 0.0
        %v307 = vrot.slane %v306, 4
        %v308 = vadd.f32 %v306, %v307
        %v309 = vrot.slane %v308, 2
        %v310 = vadd.f32 %v308, %v309
        %v311 = vrot.slane %v310, 1
        %v312 = vadd.f32 %v310, %v311
        %v313 = vadd.f32 %v305, 0.0
        %v314 = vadd.f32 %v312, 0.0
        %v315 = vsel %vm298, %v294, -inf
        %v316 = vrot.slane %v315, 4
        %v317 = vmax.f32 %v315, %v316
        %v318 = vrot.slane %v317, 2
        %v319 = vmax.f32 %v317, %v318
        %v320 = vrot.slane %v319, 1
        %v321 = vmax.f32 %v319, %v320
        %v322 = vsel %vm298, %v296, -inf
        %v323 = vrot.slane %v322, 4
        %v324 = vmax.f32 %v322, %v323
        %v325 = vrot.slane %v324, 2
        %v326 = vmax.f32 %v324, %v325
        %v327 = vrot.slane %v326, 1
        %v328 = vmax.f32 %v326, %v327
        %v329 = vmul.f32 %v313, 0.25
        %v330 = vmul.f32 %v314, 0.25
        %v333 = vcombine.low %v329, %v330
        %v335 = vunpack.c.l.s4 1966171168
        %v336 = vunpack.c.0.s8 %v335
        %v337 = vlaneseq
        %v338 = vshrl.u32 %v337, 7
        %v339 = vsub.s32 %v336, %v338
        %v340 = vrot.slane %v333, %v339
        %v342 = vunpack.c.l.s4 1966171168
        %v343 = vunpack.c.0.s8 %v342
        %v344 = vlaneseq
        %v345 = vshrl.u32 %v344, 7
        %v346 = vsub.s32 %v343, %v345
        %v347 = vrot.slane %v340, %v346
        %348 = vrot.lane.b32.xlu0 %v347, 48
        %v349 = vpop.permute.xlu0 %348
        %v350 = vrot.slane %v349, 7
        %vm351 = vcmask 392192
        %v352 = vsel %vm351, %v350, %v349
        %vm354 = vcmp.ge.s32.totalorder %v289, 48
        %vm355 = vcmp.lt.s32.totalorder %v289, 304
        %vm356 = vmand %vm354, %vm355
        %357 = vst.msk [vmem:[#allocation2] ss:$2 sm:$0x7] %vm356, %v352
        %v360 = vcombine.low %v321, %v328
        %v362 = vunpack.c.l.s4 1966171168
        %v363 = vunpack.c.0.s8 %v362
        %v364 = vlaneseq
        %v365 = vshrl.u32 %v364, 7
        %v366 = vsub.s32 %v363, %v365
        %v367 = vrot.slane %v360, %v366
        %v369 = vunpack.c.l.s4 1966171168
        %v370 = vunpack.c.0.s8 %v369
        %v371 = vlaneseq
        %v372 = vshrl.u32 %v371, 7
        %v373 = vsub.s32 %v370, %v372
        %v374 = vrot.slane %v367, %v373
        %375 = vrot.lane.b32.xlu0 %v374, 48
        %v376 = vpop.permute.xlu0 %375
        %v377 = vrot.slane %v376, 7
        %v378 = vsel %vm351, %v377, %v376
        %s380 = scalar_lea.vmem [#allocation2], 1
        %381 = vst.msk [vmem:[%s380] ss:$2 sm:$0x7] %vm356, %v378
        %v382 = vld [vmem:[#allocation2] ss:$2 sm:$0x3]
        %v383 = vld [vmem:[#allocation2] ss:$2 sm:$0x7]
        %v384 = vld [vmem:[%s380] ss:$2 sm:$0x3]
        %v385 = vld [vmem:[%s380] ss:$2 sm:$0x7]
        %v386 = vstv %s185
        %v387 = vmul.f32 %v386, %v382
        %v388 = vadd.f32 %v387, 0.0
        %v389 = vstv %s192
        %v390 = vmul.f32 %v389, %v383
        %392 = vrot.lane.b32.xlu0 %v390, 112
        %v393 = vpop.permute.xlu0 %392
        %v394 = vrot.slane %v393, 1
        %vm395 = vcmask 916480
        %v396 = vsel %vm395, %v393, %v394
        %v398 = vadd.f32 %v388, %v396
        %v399 = vstv %s199
        %v400 = vmul.f32 %v399, %v383
        %402 = vrot.lane.b32.xlu0 %v400, 96
        %v403 = vpop.permute.xlu0 %402
        %v404 = vrot.slane %v403, 1
        %vm405 = vcmask 785408
        %v406 = vsel %vm405, %v403, %v404
        %v408 = vadd.f32 %v398, %v406
        %v409 = vstv %s206
        %v410 = vmul.f32 %v409, %v383
        %412 = vrot.lane.b32.xlu0 %v410, 80
        %v413 = vpop.permute.xlu0 %412
        %v414 = vrot.slane %v413, 1
        %vm415 = vcmask 654336
        %v416 = vsel %vm415, %v413, %v414
        %v418 = vadd.f32 %v408, %v416
        %v419 = vstv %s213
        %v420 = vmul.f32 %v419, %v383
        %422 = vrot.lane.b32.xlu0 %v420, 64
        %v423 = vpop.permute.xlu0 %422
        %v424 = vrot.slane %v423, 1
        %vm425 = vcmask 523264
        %v426 = vsel %vm425, %v423, %v424
        %v428 = vadd.f32 %v418, %v426
        %v429 = vstv %s220
        %v430 = vmul.f32 %v429, %v383
        %432 = vrot.lane.b32.xlu0 %v430, 48
        %v433 = vpop.permute.xlu0 %432
        %v434 = vrot.slane %v433, 1
        %v435 = vsel %vm351, %v433, %v434
        %v437 = vadd.f32 %v428, %v435
        %v438 = vstv %s227
        %v439 = vmul.f32 %v438, %v383
        %441 = vrot.lane.b32.xlu0 %v439, 32
        %v442 = vpop.permute.xlu0 %441
        %v443 = vrot.slane %v442, 1
        %vm444 = vcmask 261120
        %v445 = vsel %vm444, %v442, %v443
        %v447 = vadd.f32 %v437, %v445
        %v448 = vstv %s234
        %v449 = vmul.f32 %v448, %v384
        %v450 = vadd.f32 %v447, %v449
        %v451 = vstv %s241
        %v452 = vmul.f32 %v451, %v385
        %454 = vrot.lane.b32.xlu0 %v452, 112
        %v455 = vpop.permute.xlu0 %454
        %v456 = vrot.slane %v455, 1
        %v457 = vsel %vm395, %v455, %v456
        %v459 = vadd.f32 %v450, %v457
        %v460 = vstv %s248
        %v461 = vmul.f32 %v460, %v385
        %463 = vrot.lane.b32.xlu0 %v461, 96
        %v464 = vpop.permute.xlu0 %463
        %v465 = vrot.slane %v464, 1
        %v466 = vsel %vm405, %v464, %v465
        %v468 = vadd.f32 %v459, %v466
        %v469 = vstv %s255
        %v470 = vmul.f32 %v469, %v385
        %472 = vrot.lane.b32.xlu0 %v470, 80
        %v473 = vpop.permute.xlu0 %472
        %v474 = vrot.slane %v473, 1
        %v475 = vsel %vm415, %v473, %v474
        %v477 = vadd.f32 %v468, %v475
        %v478 = vstv %s262
        %v479 = vmul.f32 %v478, %v385
        %481 = vrot.lane.b32.xlu0 %v479, 64
        %v482 = vpop.permute.xlu0 %481
        %v483 = vrot.slane %v482, 1
        %v484 = vsel %vm425, %v482, %v483
        %v486 = vadd.f32 %v477, %v484
        %v487 = vstv %s269
        %v488 = vmul.f32 %v487, %v385
        %490 = vrot.lane.b32.xlu0 %v488, 48
        %v491 = vpop.permute.xlu0 %490
        %v492 = vrot.slane %v491, 1
        %v493 = vsel %vm351, %v491, %v492
        %v495 = vadd.f32 %v486, %v493
        %v496 = vstv %s276
        %v497 = vmul.f32 %v496, %v385
        %499 = vrot.lane.b32.xlu0 %v497, 32
        %v500 = vpop.permute.xlu0 %499
        %v501 = vrot.slane %v500, 1
        %v502 = vsel %vm444, %v500, %v501
        %v504 = vadd.f32 %v495, %v502
        %506 = vrot.lane.b32.xlu0 %v504, 3
        %v507 = vpop.permute.xlu0 %506
        %v508 = vrot.slane %v507, 7
        %vm509 = vcmask 23552
        %v510 = vsel %vm509, %v508, %v507
        %vm512 = vcmp.ge.s32.totalorder %v289, 3
        %vm513 = vcmp.lt.s32.totalorder %v289, 259
        %vm514 = vmand %vm512, %vm513
        %515 = vst.msk [vmem:[#allocation3] sm:$0x7] %vm514, %v510
        %v516 = vld [vmem:[%s1] ss:$8 sm:$0x3]
        %v517 = vld [vmem:[#allocation3] sm:$0x3]
        %v518 = vmul.f32 %v516, %v517
        %v519 = vadd.f32 %v518, 0.0
        %v520 = vstv %s186
        %v521 = vmul.f32 %v520, %v382
        %v522 = vadd.f32 %v521, 0.0
        %v523 = vstv %s193
        %v524 = vmul.f32 %v523, %v383
        %526 = vrot.lane.b32.xlu0 %v524, 112
        %v527 = vpop.permute.xlu0 %526
        %v528 = vrot.slane %v527, 1
        %v529 = vsel %vm395, %v527, %v528
        %v531 = vadd.f32 %v522, %v529
        %v532 = vstv %s200
        %v533 = vmul.f32 %v532, %v383
        %535 = vrot.lane.b32.xlu0 %v533, 96
        %v536 = vpop.permute.xlu0 %535
        %v537 = vrot.slane %v536, 1
        %v538 = vsel %vm405, %v536, %v537
        %v540 = vadd.f32 %v531, %v538
        %v541 = vstv %s207
        %v542 = vmul.f32 %v541, %v383
        %544 = vrot.lane.b32.xlu0 %v542, 80
        %v545 = vpop.permute.xlu0 %544
        %v546 = vrot.slane %v545, 1
        %v547 = vsel %vm415, %v545, %v546
        %v549 = vadd.f32 %v540, %v547
        %v550 = vstv %s214
        %v551 = vmul.f32 %v550, %v383
        %553 = vrot.lane.b32.xlu0 %v551, 64
        %v554 = vpop.permute.xlu0 %553
        %v555 = vrot.slane %v554, 1
        %v556 = vsel %vm425, %v554, %v555
        %v558 = vadd.f32 %v549, %v556
        %v559 = vstv %s221
        %v560 = vmul.f32 %v559, %v383
        %562 = vrot.lane.b32.xlu0 %v560, 48
        %v563 = vpop.permute.xlu0 %562
        %v564 = vrot.slane %v563, 1
        %v565 = vsel %vm351, %v563, %v564
        %v567 = vadd.f32 %v558, %v565
        %v568 = vstv %s228
        %v569 = vmul.f32 %v568, %v383
        %571 = vrot.lane.b32.xlu0 %v569, 32
        %v572 = vpop.permute.xlu0 %571
        %v573 = vrot.slane %v572, 1
        %v574 = vsel %vm444, %v572, %v573
        %v576 = vadd.f32 %v567, %v574
        %v577 = vstv %s235
        %v578 = vmul.f32 %v577, %v384
        %v579 = vadd.f32 %v576, %v578
        %v580 = vstv %s242
        %v581 = vmul.f32 %v580, %v385
        %583 = vrot.lane.b32.xlu0 %v581, 112
        %v584 = vpop.permute.xlu0 %583
        %v585 = vrot.slane %v584, 1
        %v586 = vsel %vm395, %v584, %v585
        %v588 = vadd.f32 %v579, %v586
        %v589 = vstv %s249
        %v590 = vmul.f32 %v589, %v385
        %592 = vrot.lane.b32.xlu0 %v590, 96
        %v593 = vpop.permute.xlu0 %592
        %v594 = vrot.slane %v593, 1
        %v595 = vsel %vm405, %v593, %v594
        %v597 = vadd.f32 %v588, %v595
        %v598 = vstv %s256
        %v599 = vmul.f32 %v598, %v385
        %601 = vrot.lane.b32.xlu0 %v599, 80
        %v602 = vpop.permute.xlu0 %601
        %v603 = vrot.slane %v602, 1
        %v604 = vsel %vm415, %v602, %v603
        %v606 = vadd.f32 %v597, %v604
        %v607 = vstv %s263
        %v608 = vmul.f32 %v607, %v385
        %610 = vrot.lane.b32.xlu0 %v608, 64
        %v611 = vpop.permute.xlu0 %610
        %v612 = vrot.slane %v611, 1
        %v613 = vsel %vm425, %v611, %v612
        %v615 = vadd.f32 %v606, %v613
        %v616 = vstv %s270
        %v617 = vmul.f32 %v616, %v385
        %619 = vrot.lane.b32.xlu0 %v617, 48
        %v620 = vpop.permute.xlu0 %619
        %v621 = vrot.slane %v620, 1
        %v622 = vsel %vm351, %v620, %v621
        %v624 = vadd.f32 %v615, %v622
        %v625 = vstv %s277
        %v626 = vmul.f32 %v625, %v385
        %628 = vrot.lane.b32.xlu0 %v626, 32
        %v629 = vpop.permute.xlu0 %628
        %v630 = vrot.slane %v629, 1
        %v631 = vsel %vm444, %v629, %v630
        %v633 = vadd.f32 %v624, %v631
        %635 = vrot.lane.b32.xlu0 %v633, 3
        %v636 = vpop.permute.xlu0 %635
        %v637 = vrot.slane %v636, 7
        %v638 = vsel %vm509, %v637, %v636
        %640 = vst.msk [vmem:[#allocation3] sm:$0x7] %vm514, %v638
        %s641 = scalar_lea.vmem %s1, 1
        %v642 = vld [vmem:[%s641] ss:$8 sm:$0x3]
        %v643 = vld [vmem:[#allocation3] sm:$0x7]
        %645 = vrot.lane.b32.xlu0 %v643, 127
        %v646 = vpop.permute.xlu0 %645
        %v647 = vrot.slane %v646, 1
        %vm648 = vcmask 1039360
        %v649 = vsel %vm648, %v646, %v647
        %v651 = vmul.f32 %v642, %v649
        %v652 = vadd.f32 %v519, %v651
        %v653 = vstv %s187
        %v654 = vmul.f32 %v653, %v382
        %v655 = vadd.f32 %v654, 0.0
        %v656 = vstv %s194
        %v657 = vmul.f32 %v656, %v383
        %659 = vrot.lane.b32.xlu0 %v657, 112
        %v660 = vpop.permute.xlu0 %659
        %v661 = vrot.slane %v660, 1
        %v662 = vsel %vm395, %v660, %v661
        %v664 = vadd.f32 %v655, %v662
        %v665 = vstv %s201
        %v666 = vmul.f32 %v665, %v383
        %668 = vrot.lane.b32.xlu0 %v666, 96
        %v669 = vpop.permute.xlu0 %668
        %v670 = vrot.slane %v669, 1
        %v671 = vsel %vm405, %v669, %v670
        %v673 = vadd.f32 %v664, %v671
        %v674 = vstv %s208
        %v675 = vmul.f32 %v674, %v383
        %677 = vrot.lane.b32.xlu0 %v675, 80
        %v678 = vpop.permute.xlu0 %677
        %v679 = vrot.slane %v678, 1
        %v680 = vsel %vm415, %v678, %v679
        %v682 = vadd.f32 %v673, %v680
        %v683 = vstv %s215
        %v684 = vmul.f32 %v683, %v383
        %686 = vrot.lane.b32.xlu0 %v684, 64
        %v687 = vpop.permute.xlu0 %686
        %v688 = vrot.slane %v687, 1
        %v689 = vsel %vm425, %v687, %v688
        %v691 = vadd.f32 %v682, %v689
        %v692 = vstv %s222
        %v693 = vmul.f32 %v692, %v383
        %695 = vrot.lane.b32.xlu0 %v693, 48
        %v696 = vpop.permute.xlu0 %695
        %v697 = vrot.slane %v696, 1
        %v698 = vsel %vm351, %v696, %v697
        %v700 = vadd.f32 %v691, %v698
        %v701 = vstv %s229
        %v702 = vmul.f32 %v701, %v383
        %704 = vrot.lane.b32.xlu0 %v702, 32
        %v705 = vpop.permute.xlu0 %704
        %v706 = vrot.slane %v705, 1
        %v707 = vsel %vm444, %v705, %v706
        %v709 = vadd.f32 %v700, %v707
        %v710 = vstv %s236
        %v711 = vmul.f32 %v710, %v384
        %v712 = vadd.f32 %v709, %v711
        %v713 = vstv %s243
        %v714 = vmul.f32 %v713, %v385
        %716 = vrot.lane.b32.xlu0 %v714, 112
        %v717 = vpop.permute.xlu0 %716
        %v718 = vrot.slane %v717, 1
        %v719 = vsel %vm395, %v717, %v718
        %v721 = vadd.f32 %v712, %v719
        %v722 = vstv %s250
        %v723 = vmul.f32 %v722, %v385
        %725 = vrot.lane.b32.xlu0 %v723, 96
        %v726 = vpop.permute.xlu0 %725
        %v727 = vrot.slane %v726, 1
        %v728 = vsel %vm405, %v726, %v727
        %v730 = vadd.f32 %v721, %v728
        %v731 = vstv %s257
        %v732 = vmul.f32 %v731, %v385
        %734 = vrot.lane.b32.xlu0 %v732, 80
        %v735 = vpop.permute.xlu0 %734
        %v736 = vrot.slane %v735, 1
        %v737 = vsel %vm415, %v735, %v736
        %v739 = vadd.f32 %v730, %v737
        %v740 = vstv %s264
        %v741 = vmul.f32 %v740, %v385
        %743 = vrot.lane.b32.xlu0 %v741, 64
        %v744 = vpop.permute.xlu0 %743
        %v745 = vrot.slane %v744, 1
        %v746 = vsel %vm425, %v744, %v745
        %v748 = vadd.f32 %v739, %v746
        %v749 = vstv %s271
        %v750 = vmul.f32 %v749, %v385
        %752 = vrot.lane.b32.xlu0 %v750, 48
        %v753 = vpop.permute.xlu0 %752
        %v754 = vrot.slane %v753, 1
        %v755 = vsel %vm351, %v753, %v754
        %v757 = vadd.f32 %v748, %v755
        %v758 = vstv %s278
        %v759 = vmul.f32 %v758, %v385
        %761 = vrot.lane.b32.xlu0 %v759, 32
        %v762 = vpop.permute.xlu0 %761
        %v763 = vrot.slane %v762, 1
        %v764 = vsel %vm444, %v762, %v763
        %v766 = vadd.f32 %v757, %v764
        %768 = vrot.lane.b32.xlu0 %v766, 3
        %v769 = vpop.permute.xlu0 %768
        %v770 = vrot.slane %v769, 7
        %v771 = vsel %vm509, %v770, %v769
        %773 = vst.msk [vmem:[#allocation3] sm:$0x7] %vm514, %v771
        %s774 = scalar_lea.vmem %s1, 2
        %v775 = vld [vmem:[%s774] ss:$8 sm:$0x3]
        %v776 = vld [vmem:[#allocation3] sm:$0x7]
        %778 = vrot.lane.b32.xlu0 %v776, 126
        %v779 = vpop.permute.xlu0 %778
        %v780 = vrot.slane %v779, 1
        %vm781 = vcmask 1031168
        %v782 = vsel %vm781, %v779, %v780
        %v784 = vmul.f32 %v775, %v782
        %v785 = vadd.f32 %v652, %v784
        %v786 = vstv %s188
        %v787 = vmul.f32 %v786, %v382
        %v788 = vadd.f32 %v787, 0.0
        %v789 = vstv %s195
        %v790 = vmul.f32 %v789, %v383
        %792 = vrot.lane.b32.xlu0 %v790, 112
        %v793 = vpop.permute.xlu0 %792
        %v794 = vrot.slane %v793, 1
        %v795 = vsel %vm395, %v793, %v794
        %v797 = vadd.f32 %v788, %v795
        %v798 = vstv %s202
        %v799 = vmul.f32 %v798, %v383
        %801 = vrot.lane.b32.xlu0 %v799, 96
        %v802 = vpop.permute.xlu0 %801
        %v803 = vrot.slane %v802, 1
        %v804 = vsel %vm405, %v802, %v803
        %v806 = vadd.f32 %v797, %v804
        %v807 = vstv %s209
        %v808 = vmul.f32 %v807, %v383
        %810 = vrot.lane.b32.xlu0 %v808, 80
        %v811 = vpop.permute.xlu0 %810
        %v812 = vrot.slane %v811, 1
        %v813 = vsel %vm415, %v811, %v812
        %v815 = vadd.f32 %v806, %v813
        %v816 = vstv %s216
        %v817 = vmul.f32 %v816, %v383
        %819 = vrot.lane.b32.xlu0 %v817, 64
        %v820 = vpop.permute.xlu0 %819
        %v821 = vrot.slane %v820, 1
        %v822 = vsel %vm425, %v820, %v821
        %v824 = vadd.f32 %v815, %v822
        %v825 = vstv %s223
        %v826 = vmul.f32 %v825, %v383
        %828 = vrot.lane.b32.xlu0 %v826, 48
        %v829 = vpop.permute.xlu0 %828
        %v830 = vrot.slane %v829, 1
        %v831 = vsel %vm351, %v829, %v830
        %v833 = vadd.f32 %v824, %v831
        %v834 = vstv %s230
        %v835 = vmul.f32 %v834, %v383
        %837 = vrot.lane.b32.xlu0 %v835, 32
        %v838 = vpop.permute.xlu0 %837
        %v839 = vrot.slane %v838, 1
        %v840 = vsel %vm444, %v838, %v839
        %v842 = vadd.f32 %v833, %v840
        %v843 = vstv %s237
        %v844 = vmul.f32 %v843, %v384
        %v845 = vadd.f32 %v842, %v844
        %v846 = vstv %s244
        %v847 = vmul.f32 %v846, %v385
        %849 = vrot.lane.b32.xlu0 %v847, 112
        %v850 = vpop.permute.xlu0 %849
        %v851 = vrot.slane %v850, 1
        %v852 = vsel %vm395, %v850, %v851
        %v854 = vadd.f32 %v845, %v852
        %v855 = vstv %s251
        %v856 = vmul.f32 %v855, %v385
        %858 = vrot.lane.b32.xlu0 %v856, 96
        %v859 = vpop.permute.xlu0 %858
        %v860 = vrot.slane %v859, 1
        %v861 = vsel %vm405, %v859, %v860
        %v863 = vadd.f32 %v854, %v861
        %v864 = vstv %s258
        %v865 = vmul.f32 %v864, %v385
        %867 = vrot.lane.b32.xlu0 %v865, 80
        %v868 = vpop.permute.xlu0 %867
        %v869 = vrot.slane %v868, 1
        %v870 = vsel %vm415, %v868, %v869
        %v872 = vadd.f32 %v863, %v870
        %v873 = vstv %s265
        %v874 = vmul.f32 %v873, %v385
        %876 = vrot.lane.b32.xlu0 %v874, 64
        %v877 = vpop.permute.xlu0 %876
        %v878 = vrot.slane %v877, 1
        %v879 = vsel %vm425, %v877, %v878
        %v881 = vadd.f32 %v872, %v879
        %v882 = vstv %s272
        %v883 = vmul.f32 %v882, %v385
        %885 = vrot.lane.b32.xlu0 %v883, 48
        %v886 = vpop.permute.xlu0 %885
        %v887 = vrot.slane %v886, 1
        %v888 = vsel %vm351, %v886, %v887
        %v890 = vadd.f32 %v881, %v888
        %v891 = vstv %s279
        %v892 = vmul.f32 %v891, %v385
        %894 = vrot.lane.b32.xlu0 %v892, 32
        %v895 = vpop.permute.xlu0 %894
        %v896 = vrot.slane %v895, 1
        %v897 = vsel %vm444, %v895, %v896
        %v899 = vadd.f32 %v890, %v897
        %901 = vrot.lane.b32.xlu0 %v899, 3
        %v902 = vpop.permute.xlu0 %901
        %v903 = vrot.slane %v902, 7
        %v904 = vsel %vm509, %v903, %v902
        %906 = vst.msk [vmem:[#allocation3] sm:$0x7] %vm514, %v904
        %s907 = scalar_lea.vmem %s1, 3
        %v908 = vld [vmem:[%s907] ss:$8 sm:$0x3]
        %v909 = vld [vmem:[#allocation3] sm:$0x7]
        %911 = vrot.lane.b32.xlu0 %v909, 125
        %v912 = vpop.permute.xlu0 %911
        %v913 = vrot.slane %v912, 1
        %vm914 = vcmask 1022976
        %v915 = vsel %vm914, %v912, %v913
        %v917 = vmul.f32 %v908, %v915
        %v918 = vadd.f32 %v785, %v917
        %v919 = vstv %s189
        %v920 = vmul.f32 %v919, %v382
        %v921 = vadd.f32 %v920, 0.0
        %v922 = vstv %s196
        %v923 = vmul.f32 %v922, %v383
        %925 = vrot.lane.b32.xlu0 %v923, 112
        %v926 = vpop.permute.xlu0 %925
        %v927 = vrot.slane %v926, 1
        %v928 = vsel %vm395, %v926, %v927
        %v930 = vadd.f32 %v921, %v928
        %v931 = vstv %s203
        %v932 = vmul.f32 %v931, %v383
        %934 = vrot.lane.b32.xlu0 %v932, 96
        %v935 = vpop.permute.xlu0 %934
        %v936 = vrot.slane %v935, 1
        %v937 = vsel %vm405, %v935, %v936
        %v939 = vadd.f32 %v930, %v937
        %v940 = vstv %s210
        %v941 = vmul.f32 %v940, %v383
        %943 = vrot.lane.b32.xlu0 %v941, 80
        %v944 = vpop.permute.xlu0 %943
        %v945 = vrot.slane %v944, 1
        %v946 = vsel %vm415, %v944, %v945
        %v948 = vadd.f32 %v939, %v946
        %v949 = vstv %s217
        %v950 = vmul.f32 %v949, %v383
        %952 = vrot.lane.b32.xlu0 %v950, 64
        %v953 = vpop.permute.xlu0 %952
        %v954 = vrot.slane %v953, 1
        %v955 = vsel %vm425, %v953, %v954
        %v957 = vadd.f32 %v948, %v955
        %v958 = vstv %s224
        %v959 = vmul.f32 %v958, %v383
        %961 = vrot.lane.b32.xlu0 %v959, 48
        %v962 = vpop.permute.xlu0 %961
        %v963 = vrot.slane %v962, 1
        %v964 = vsel %vm351, %v962, %v963
        %v966 = vadd.f32 %v957, %v964
        %v967 = vstv %s231
        %v968 = vmul.f32 %v967, %v383
        %970 = vrot.lane.b32.xlu0 %v968, 32
        %v971 = vpop.permute.xlu0 %970
        %v972 = vrot.slane %v971, 1
        %v973 = vsel %vm444, %v971, %v972
        %v975 = vadd.f32 %v966, %v973
        %v976 = vstv %s238
        %v977 = vmul.f32 %v976, %v384
        %v978 = vadd.f32 %v975, %v977
        %v979 = vstv %s245
        %v980 = vmul.f32 %v979, %v385
        %982 = vrot.lane.b32.xlu0 %v980, 112
        %v983 = vpop.permute.xlu0 %982
        %v984 = vrot.slane %v983, 1
        %v985 = vsel %vm395, %v983, %v984
        %v987 = vadd.f32 %v978, %v985
        %v988 = vstv %s252
        %v989 = vmul.f32 %v988, %v385
        %991 = vrot.lane.b32.xlu0 %v989, 96
        %v992 = vpop.permute.xlu0 %991
        %v993 = vrot.slane %v992, 1
        %v994 = vsel %vm405, %v992, %v993
        %v996 = vadd.f32 %v987, %v994
        %v997 = vstv %s259
        %v998 = vmul.f32 %v997, %v385
        %1000 = vrot.lane.b32.xlu0 %v998, 80
        %v1001 = vpop.permute.xlu0 %1000
        %v1002 = vrot.slane %v1001, 1
        %v1003 = vsel %vm415, %v1001, %v1002
        %v1005 = vadd.f32 %v996, %v1003
        %v1006 = vstv %s266
        %v1007 = vmul.f32 %v1006, %v385
        %1009 = vrot.lane.b32.xlu0 %v1007, 64
        %v1010 = vpop.permute.xlu0 %1009
        %v1011 = vrot.slane %v1010, 1
        %v1012 = vsel %vm425, %v1010, %v1011
        %v1014 = vadd.f32 %v1005, %v1012
        %v1015 = vstv %s273
        %v1016 = vmul.f32 %v1015, %v385
        %1018 = vrot.lane.b32.xlu0 %v1016, 48
        %v1019 = vpop.permute.xlu0 %1018
        %v1020 = vrot.slane %v1019, 1
        %v1021 = vsel %vm351, %v1019, %v1020
        %v1023 = vadd.f32 %v1014, %v1021
        %v1024 = vstv %s280
        %v1025 = vmul.f32 %v1024, %v385
        %1027 = vrot.lane.b32.xlu0 %v1025, 32
        %v1028 = vpop.permute.xlu0 %1027
        %v1029 = vrot.slane %v1028, 1
        %v1030 = vsel %vm444, %v1028, %v1029
        %v1032 = vadd.f32 %v1023, %v1030
        %1034 = vrot.lane.b32.xlu0 %v1032, 3
        %v1035 = vpop.permute.xlu0 %1034
        %v1036 = vrot.slane %v1035, 7
        %v1037 = vsel %vm509, %v1036, %v1035
        %1039 = vst.msk [vmem:[#allocation3] sm:$0x7] %vm514, %v1037
        %s1040 = scalar_lea.vmem %s1, 4
        %v1041 = vld [vmem:[%s1040] ss:$8 sm:$0x3]
        %v1042 = vld [vmem:[#allocation3] sm:$0x7]
        %1044 = vrot.lane.b32.xlu0 %v1042, 124
        %v1045 = vpop.permute.xlu0 %1044
        %v1046 = vrot.slane %v1045, 1
        %vm1047 = vcmask 1014784
        %v1048 = vsel %vm1047, %v1045, %v1046
        %v1050 = vmul.f32 %v1041, %v1048
        %v1051 = vadd.f32 %v918, %v1050
        %v1052 = vstv %s190
        %v1053 = vmul.f32 %v1052, %v382
        %v1054 = vadd.f32 %v1053, 0.0
        %v1055 = vstv %s197
        %v1056 = vmul.f32 %v1055, %v383
        %1058 = vrot.lane.b32.xlu0 %v1056, 112
        %v1059 = vpop.permute.xlu0 %1058
        %v1060 = vrot.slane %v1059, 1
        %v1061 = vsel %vm395, %v1059, %v1060
        %v1063 = vadd.f32 %v1054, %v1061
        %v1064 = vstv %s204
        %v1065 = vmul.f32 %v1064, %v383
        %1067 = vrot.lane.b32.xlu0 %v1065, 96
        %v1068 = vpop.permute.xlu0 %1067
        %v1069 = vrot.slane %v1068, 1
        %v1070 = vsel %vm405, %v1068, %v1069
        %v1072 = vadd.f32 %v1063, %v1070
        %v1073 = vstv %s211
        %v1074 = vmul.f32 %v1073, %v383
        %1076 = vrot.lane.b32.xlu0 %v1074, 80
        %v1077 = vpop.permute.xlu0 %1076
        %v1078 = vrot.slane %v1077, 1
        %v1079 = vsel %vm415, %v1077, %v1078
        %v1081 = vadd.f32 %v1072, %v1079
        %v1082 = vstv %s218
        %v1083 = vmul.f32 %v1082, %v383
        %1085 = vrot.lane.b32.xlu0 %v1083, 64
        %v1086 = vpop.permute.xlu0 %1085
        %v1087 = vrot.slane %v1086, 1
        %v1088 = vsel %vm425, %v1086, %v1087
        %v1090 = vadd.f32 %v1081, %v1088
        %v1091 = vstv %s225
        %v1092 = vmul.f32 %v1091, %v383
        %1094 = vrot.lane.b32.xlu0 %v1092, 48
        %v1095 = vpop.permute.xlu0 %1094
        %v1096 = vrot.slane %v1095, 1
        %v1097 = vsel %vm351, %v1095, %v1096
        %v1099 = vadd.f32 %v1090, %v1097
        %v1100 = vstv %s232
        %v1101 = vmul.f32 %v1100, %v383
        %1103 = vrot.lane.b32.xlu0 %v1101, 32
        %v1104 = vpop.permute.xlu0 %1103
        %v1105 = vrot.slane %v1104, 1
        %v1106 = vsel %vm444, %v1104, %v1105
        %v1108 = vadd.f32 %v1099, %v1106
        %v1109 = vstv %s239
        %v1110 = vmul.f32 %v1109, %v384
        %v1111 = vadd.f32 %v1108, %v1110
        %v1112 = vstv %s246
        %v1113 = vmul.f32 %v1112, %v385
        %1115 = vrot.lane.b32.xlu0 %v1113, 112
        %v1116 = vpop.permute.xlu0 %1115
        %v1117 = vrot.slane %v1116, 1
        %v1118 = vsel %vm395, %v1116, %v1117
        %v1120 = vadd.f32 %v1111, %v1118
        %v1121 = vstv %s253
        %v1122 = vmul.f32 %v1121, %v385
        %1124 = vrot.lane.b32.xlu0 %v1122, 96
        %v1125 = vpop.permute.xlu0 %1124
        %v1126 = vrot.slane %v1125, 1
        %v1127 = vsel %vm405, %v1125, %v1126
        %v1129 = vadd.f32 %v1120, %v1127
        %v1130 = vstv %s260
        %v1131 = vmul.f32 %v1130, %v385
        %1133 = vrot.lane.b32.xlu0 %v1131, 80
        %v1134 = vpop.permute.xlu0 %1133
        %v1135 = vrot.slane %v1134, 1
        %v1136 = vsel %vm415, %v1134, %v1135
        %v1138 = vadd.f32 %v1129, %v1136
        %v1139 = vstv %s267
        %v1140 = vmul.f32 %v1139, %v385
        %1142 = vrot.lane.b32.xlu0 %v1140, 64
        %v1143 = vpop.permute.xlu0 %1142
        %v1144 = vrot.slane %v1143, 1
        %v1145 = vsel %vm425, %v1143, %v1144
        %v1147 = vadd.f32 %v1138, %v1145
        %v1148 = vstv %s274
        %v1149 = vmul.f32 %v1148, %v385
        %1151 = vrot.lane.b32.xlu0 %v1149, 48
        %v1152 = vpop.permute.xlu0 %1151
        %v1153 = vrot.slane %v1152, 1
        %v1154 = vsel %vm351, %v1152, %v1153
        %v1156 = vadd.f32 %v1147, %v1154
        %v1157 = vstv %s281
        %v1158 = vmul.f32 %v1157, %v385
        %1160 = vrot.lane.b32.xlu0 %v1158, 32
        %v1161 = vpop.permute.xlu0 %1160
        %v1162 = vrot.slane %v1161, 1
        %v1163 = vsel %vm444, %v1161, %v1162
        %v1165 = vadd.f32 %v1156, %v1163
        %1167 = vrot.lane.b32.xlu0 %v1165, 3
        %v1168 = vpop.permute.xlu0 %1167
        %v1169 = vrot.slane %v1168, 7
        %v1170 = vsel %vm509, %v1169, %v1168
        %1172 = vst.msk [vmem:[#allocation3] sm:$0x7] %vm514, %v1170
        %s1173 = scalar_lea.vmem %s1, 5
        %v1174 = vld [vmem:[%s1173] ss:$8 sm:$0x3]
        %v1175 = vld [vmem:[#allocation3] sm:$0x7]
        %1177 = vrot.lane.b32.xlu0 %v1175, 123
        %v1178 = vpop.permute.xlu0 %1177
        %v1179 = vrot.slane %v1178, 1
        %vm1180 = vcmask 1006592
        %v1181 = vsel %vm1180, %v1178, %v1179
        %v1183 = vmul.f32 %v1174, %v1181
        %v1184 = vadd.f32 %v1051, %v1183
        %v1185 = vstv %s191
        %v1186 = vmul.f32 %v1185, %v382
        %v1187 = vadd.f32 %v1186, 0.0
        %v1188 = vstv %s198
        %v1189 = vmul.f32 %v1188, %v383
        %1191 = vrot.lane.b32.xlu0 %v1189, 112
        %v1192 = vpop.permute.xlu0 %1191
        %v1193 = vrot.slane %v1192, 1
        %v1194 = vsel %vm395, %v1192, %v1193
        %v1196 = vadd.f32 %v1187, %v1194
        %v1197 = vstv %s205
        %v1198 = vmul.f32 %v1197, %v383
        %1200 = vrot.lane.b32.xlu0 %v1198, 96
        %v1201 = vpop.permute.xlu0 %1200
        %v1202 = vrot.slane %v1201, 1
        %v1203 = vsel %vm405, %v1201, %v1202
        %v1205 = vadd.f32 %v1196, %v1203
        %v1206 = vstv %s212
        %v1207 = vmul.f32 %v1206, %v383
        %1209 = vrot.lane.b32.xlu0 %v1207, 80
        %v1210 = vpop.permute.xlu0 %1209
        %v1211 = vrot.slane %v1210, 1
        %v1212 = vsel %vm415, %v1210, %v1211
        %v1214 = vadd.f32 %v1205, %v1212
        %v1215 = vstv %s219
        %v1216 = vmul.f32 %v1215, %v383
        %1218 = vrot.lane.b32.xlu0 %v1216, 64
        %v1219 = vpop.permute.xlu0 %1218
        %v1220 = vrot.slane %v1219, 1
        %v1221 = vsel %vm425, %v1219, %v1220
        %v1223 = vadd.f32 %v1214, %v1221
        %v1224 = vstv %s226
        %v1225 = vmul.f32 %v1224, %v383
        %1227 = vrot.lane.b32.xlu0 %v1225, 48
        %v1228 = vpop.permute.xlu0 %1227
        %v1229 = vrot.slane %v1228, 1
        %v1230 = vsel %vm351, %v1228, %v1229
        %v1232 = vadd.f32 %v1223, %v1230
        %v1233 = vstv %s233
        %v1234 = vmul.f32 %v1233, %v383
        %1236 = vrot.lane.b32.xlu0 %v1234, 32
        %v1237 = vpop.permute.xlu0 %1236
        %v1238 = vrot.slane %v1237, 1
        %v1239 = vsel %vm444, %v1237, %v1238
        %v1241 = vadd.f32 %v1232, %v1239
        %v1242 = vstv %s240
        %v1243 = vmul.f32 %v1242, %v384
        %v1244 = vadd.f32 %v1241, %v1243
        %v1245 = vstv %s247
        %v1246 = vmul.f32 %v1245, %v385
        %1248 = vrot.lane.b32.xlu0 %v1246, 112
        %v1249 = vpop.permute.xlu0 %1248
        %v1250 = vrot.slane %v1249, 1
        %v1251 = vsel %vm395, %v1249, %v1250
        %v1253 = vadd.f32 %v1244, %v1251
        %v1254 = vstv %s254
        %v1255 = vmul.f32 %v1254, %v385
        %1257 = vrot.lane.b32.xlu0 %v1255, 96
        %v1258 = vpop.permute.xlu0 %1257
        %v1259 = vrot.slane %v1258, 1
        %v1260 = vsel %vm405, %v1258, %v1259
        %v1262 = vadd.f32 %v1253, %v1260
        %v1263 = vstv %s261
        %v1264 = vmul.f32 %v1263, %v385
        %1266 = vrot.lane.b32.xlu0 %v1264, 80
        %v1267 = vpop.permute.xlu0 %1266
        %v1268 = vrot.slane %v1267, 1
        %v1269 = vsel %vm415, %v1267, %v1268
        %v1271 = vadd.f32 %v1262, %v1269
        %v1272 = vstv %s268
        %v1273 = vmul.f32 %v1272, %v385
        %1275 = vrot.lane.b32.xlu0 %v1273, 64
        %v1276 = vpop.permute.xlu0 %1275
        %v1277 = vrot.slane %v1276, 1
        %v1278 = vsel %vm425, %v1276, %v1277
        %v1280 = vadd.f32 %v1271, %v1278
        %v1281 = vstv %s275
        %v1282 = vmul.f32 %v1281, %v385
        %1284 = vrot.lane.b32.xlu0 %v1282, 48
        %v1285 = vpop.permute.xlu0 %1284
        %v1286 = vrot.slane %v1285, 1
        %v1287 = vsel %vm351, %v1285, %v1286
        %v1289 = vadd.f32 %v1280, %v1287
        %v1290 = vstv %s282
        %v1291 = vmul.f32 %v1290, %v385
        %1293 = vrot.lane.b32.xlu0 %v1291, 32
        %v1294 = vpop.permute.xlu0 %1293
        %v1295 = vrot.slane %v1294, 1
        %v1296 = vsel %vm444, %v1294, %v1295
        %v1298 = vadd.f32 %v1289, %v1296
        %1300 = vrot.lane.b32.xlu0 %v1298, 3
        %v1301 = vpop.permute.xlu0 %1300
        %v1302 = vrot.slane %v1301, 7
        %v1303 = vsel %vm509, %v1302, %v1301
        %1305 = vst.msk [vmem:[#allocation3] sm:$0x7] %vm514, %v1303
        %s1306 = scalar_lea.vmem %s1, 6
        %v1307 = vld [vmem:[%s1306] ss:$8 sm:$0x3]
        %v1308 = vld [vmem:[#allocation3] sm:$0x7]
        %1310 = vrot.lane.b32.xlu0 %v1308, 122
        %v1311 = vpop.permute.xlu0 %1310
        %v1312 = vrot.slane %v1311, 1
        %vm1313 = vcmask 998400
        %v1314 = vsel %vm1313, %v1311, %v1312
        %v1316 = vmul.f32 %v1307, %v1314
        %v1317 = vadd.f32 %v1184, %v1316
        %v1318 = vxor.u32 %v1317, 2147483648
        %v1319 = vmul.f32 %v1318, 1.442695
        %v1320 = vpow.pop %v1319
        %v1321 = vadd.f32 %v1320, 1.0
        %v1322 = vrcp.pop %v1321
        %v1323 = vmul.f32 1.0, %v1322
        %v1324 = vld [vmem:[%s179] sm:$0xff]
        %v1326 = vlaneseq
        %v1327 = vshrl.u32 %v1326, 7
        %v1328 = vsub.s32 0, %v1327
        %v1329 = vrot.slane %v1323, %v1328
        %v1330 = vlaneseq
        %v1331 = vshrl.u32 %v1330, 7
        %v1332 = vsub.s32 1, %v1331
        %v1333 = vrot.slane %v1323, %v1332
        %v1334 = vcombine.low %v1329, %v1333
        %v1336 = vmul.f32 %v1324, %v1334
        %1337 = vst [vmem:[%s184] sm:$0xff] %v1336
        %p1338 = scmp.lt.s32.totalorder %s15, 1
        %s1339 = scalar_select %p1338, %s15, 1
        %s1340 = smul.addr %s1339, 2
        %s1341 = smul.addr %s1340, 4
        %s1342 = scalar_lea.vmem %s3, %s1341
        // Predicated region
        $region37: #{spatial_attention.1} parent=31 // pred_check
          %p1343 = pneg %p101
        $region38: #{spatial_attention.1} parent=31 // pred_check_branch
          %1345 = sbr.rel (%p1343) target = $region40
        $region39: #{spatial_attention.1} parent=31 // pred_region
          _
        $region40: #{spatial_attention.1} parent=31 // pred_fallthru
          _
      $region32: #{spatial_attention.1} parent=5 // pred_fallthru
        _
      %p1346 = scmp.le.s32.totalorder 2, %s10
      // Predicated region
      $region41: #{spatial_attention.1} parent=5 // pred_check
        %p1347 = pneg %p1346
      $region42: #{spatial_attention.1} parent=5 // pred_check_branch
        %1349 = sbr.rel (%p1347) target = $region44
      $region43: #{spatial_attention.1} parent=5 // pred_region
        %s1350 = ssub.s32 %s10, 2
        // Predicated region
        $region45: #{spatial_attention.1} parent=43 // pred_check
          %p1351 = pneg %p107
        $region46: #{spatial_attention.1} parent=43 // pred_check_branch
          %1353 = sbr.rel (%p1351) target = $region48
        $region47: #{spatial_attention.1} parent=43 // pred_region
          %p1354 = scmp.lt.s32.totalorder %s16, 1
          %s1355 = scalar_select %p1354, %s16, 1
          %s1356 = smul.addr %s1355, 2
          %s1357 = smul.addr %s1356, 4
          %s1358 = scalar_lea.vmem %s3, %s1357
        $region48: #{spatial_attention.1} parent=43 // pred_fallthru
          _
      $region44: #{spatial_attention.1} parent=5 // pred_fallthru
        _
    $region6: #{spatial_attention.1} parent=1 // loop_footer
      %s14 = sadd.s32 1, %s10
    $region7: #{spatial_attention.1} parent=1 // loop_footer_branch
      %9 = sbr.rel target = $region3
    $region8: #{spatial_attention.1} parent=1 // loop_exit
      _
    %1359 = vsyncpa [#allocation5], 1
    %s1360 = scalar_lea.sflag [#allocation5], 1
    %1361 = vsyncpa %s1360, 1

</llo_original>
